<compile_context>
chip_gen: v7x
topology: tpu7x:2x2x1
jax: 0.10.0
libtpu: 0.0.40
codegen_flags: <defaults>
</compile_context>

<pallas_src>
import functools

import jax
import jax.numpy as jnp
from jax import lax
from jax.experimental import pallas as pl
from jax.experimental.pallas import tpu as pltpu
import numpy as np


# ----------------------------------------------------------------------------
# Pallas kernel: one (batch-group, n-chunk) tile per grid step.
# ----------------------------------------------------------------------------
def _fp_kernel(unknown_ref, known_ref, uf_ref, kf_ref,
               w1a_ref, w1b_ref, b1_ref, w2_ref, b2_ref, o_ref):
    f32 = jnp.float32
    G, _, nc = unknown_ref.shape          # (G, 3, nc)   unknown xyz^T
    m = known_ref.shape[2]                # (G, 8, m)    known xyz^T (3 rows used)

    # Hoisted: identical for every g (Mosaic/JAX won't CSE these).
    row_idx = lax.broadcasted_iota(jnp.int32, (m, nc), 0)
    big = jnp.float32(1e30)
    w1a = w1a_ref[...]
    w1b = w1b_ref[...]
    b1 = b1_ref[...]
    w2 = w2_ref[...]
    b2 = b2_ref[...]
    mxu_dt = w1a.dtype

    for g in range(G):                    # static unroll; G defaults to 1
        ut = unknown_ref[g].astype(f32)                  # (3, nc)
        kmc = jnp.transpose(known_ref[g].astype(f32))    # (8, m) -> (m, 8)
        kfe = kf_ref[g]                                  # (C2, m), MXU dtype

        # --- pairwise squared distances, transposed (m, nc): n lane-dense ----
        diff = kmc[:, 0:1] - ut[0:1, :]                  # (m,1)-(1,nc) -> (m,nc)
        d2t = diff * diff
        for c in (1, 2):
            diff = kmc[:, c:c + 1] - ut[c:c + 1, :]
            d2t = d2t + diff * diff

        # --- three_nn on d^2 (smallest-index tie break); sqrt only 3 minima --
        remaining = d2t
        w_unnorm_t = None                                # unnormalized W^T (m, nc)
        norm = None                                      # (1, nc)
        for it in range(3):
            minval = jnp.min(remaining, axis=0, keepdims=True)          # (1, nc)
            cand = remaining <= minval
            sel = jnp.min(jnp.where(cand, row_idx, m), axis=0, keepdims=True)
            mask = row_idx == sel                                       # (m, nc) bool
            dist_k = jnp.sqrt(jnp.maximum(minval, 0.0))                 # (1, nc)
            recip = pl.reciprocal(dist_k + 1e-8, approx=True)           # (1, nc)
            contrib = jnp.where(mask, recip, 0.0)
            w_unnorm_t = contrib if it == 0 else w_unnorm_t + contrib
            norm = recip if it == 0 else norm + recip
            if it < 2:                                   # last update is dead
                remaining = jnp.where(mask, big, remaining)

        # --- three_interpolate: (C2, m) @ (m, nc); normalize after matmul ----
        interp = jnp.dot(kfe, w_unnorm_t.astype(kfe.dtype),
                         preferred_element_type=f32)
        interp = interp * pl.reciprocal(norm, approx=True)              # (C2, nc)

        # --- shared MLP: BN folded into weights, concat avoided by split -----
        h = (jnp.dot(w1a, interp.astype(mxu_dt), preferred_element_type=f32)
             + jnp.dot(w1b, uf_ref[g], preferred_element_type=f32)
             + b1)
        h = jnp.maximum(h, 0.0)
        out = jnp.dot(w2, h.astype(mxu_dt), preferred_element_type=f32) + b2
        o_ref[g] = jnp.maximum(out, 0.0).astype(o_ref.dtype)


def _round_up(x, k):
    return ((x + k - 1) // k) * k


# ----------------------------------------------------------------------------
# Wrapper
# ----------------------------------------------------------------------------
@functools.partial(
    jax.jit,
    static_argnames=("group_size", "n_chunk", "vmem_limit_bytes", "use_bf16"))
def pointnet_fp_forward(unknown, known, unknow_feats, known_feats,
                        w1, s1, b1, w2, s2, b2,
                        *, group_size=1, n_chunk=None,
                        vmem_limit_bytes=None, use_bf16=True):
    """unknown (B,n,3), known (B,m,3), unknow_feats (B,C1,n), known_feats (B,C2,m).
       w1 (H, C2+C1) columns ordered [interp | unknow_feats]; s*/b* are the
       folded inference-mode BN affine (shape (*,1))."""
    B, n, _ = unknown.shape
    _, m, _ = known.shape
    C1 = unknow_feats.shape[1]
    C2 = known_feats.shape[1]
    Cout = w2.shape[0]

    G = group_size
    assert B % G == 0, (B, G)

    # Pad n to a multiple of 128 so output stores stay lane-dense (unmasked vst).
    n_pad = _round_up(n, 128)

    # Derive n_chunk from m + a VMEM-temporaries budget: the selection loop
    # keeps ~6 live (m, nc) f32 arrays per live batch element.
    if n_chunk is None:
        budget = 8 << 20                                  # ~8 MiB of temporaries
        nc_cap = max(128, budget // (6 * 4 * m * G))
        n_chunk = 128
        for c in (2048, 1024, 512, 256, 128):
            if c <= nc_cap and c <= n_pad and n_pad % c == 0:
                n_chunk = c
                break
    nc = n_chunk
    assert n_pad % nc == 0, (n, n_pad, nc)

    mxu_dt = jnp.bfloat16 if use_bf16 else jnp.float32

    # Host-side re-layout + BN folding (plain XLA ops outside the kernel).
    unknown_t = jnp.transpose(unknown, (0, 2, 1))         # (B, 3, n)  n lane-dense
    known_t = jnp.transpose(known, (0, 2, 1))             # (B, 3, m)  m lane-dense
    known_t = jnp.pad(known_t, ((0, 0), (0, 5), (0, 0)))  # (B, 8, m)  sublane-aligned
    uf_in = unknow_feats.astype(mxu_dt)
    kf_in = known_feats.astype(mxu_dt)
    w1a = (w1[:, :C2] * s1).astype(mxu_dt)                # conv1, interp channels
    w1b = (w1[:, C2:] * s1).astype(mxu_dt)                # conv1, unknow_feats channels
    w2f = (w2 * s2).astype(mxu_dt)
    b1f = b1.astype(jnp.float32)
    b2f = b2.astype(jnp.float32)

    if n_pad != n:
        pad = n_pad - n
        unknown_t = jnp.pad(unknown_t, ((0, 0), (0, 0), (0, pad)))
        uf_in = jnp.pad(uf_in, ((0, 0), (0, 0), (0, pad)))

    # t innermost so known / known_feats blocks are not re-fetched per chunk.
    grid = (B // G, n_pad // nc)

    def shared(arr):
        nd = arr.ndim
        return pl.BlockSpec(arr.shape, lambda b, t: (0,) * nd)

    cp = dict(dimension_semantics=("parallel", "parallel"))
    if vmem_limit_bytes is not None:
        cp["vmem_limit_bytes"] = vmem_limit_bytes

    out = pl.pallas_call(
        _fp_kernel,
        out_shape=jax.ShapeDtypeStruct((B, Cout, n_pad), jnp.float32),
        grid_spec=pltpu.PrefetchScalarGridSpec(
            num_scalar_prefetch=0,
            grid=grid,
            in_specs=[
                pl.BlockSpec((G, 3, nc), lambda b, t: (b, 0, t)),   # unknown^T
                pl.BlockSpec((G, 8, m), lambda b, t: (b, 0, 0)),    # known^T (padded)
                pl.BlockSpec((G, C1, nc), lambda b, t: (b, 0, t)),  # unknow_feats
                pl.BlockSpec((G, C2, m), lambda b, t: (b, 0, 0)),   # known_feats
                shared(w1a), shared(w1b), shared(b1f),
                shared(w2f), shared(b2f),
            ],
            out_specs=pl.BlockSpec((G, Cout, nc), lambda b, t: (b, 0, t)),
        ),
        compiler_params=pltpu.CompilerParams(**cp),
    )(unknown_t, known_t, uf_in, kf_in, w1a, w1b, b1f, w2f, b2f)

    return out[:, :, :n] if n_pad != n else out


# ----------------------------------------------------------------------------
# Pure-JAX reference (f32, exact recips): same semantics as the module.
# ----------------------------------------------------------------------------
def reference_forward(unknown, known, unknow_feats, known_feats,
                      w1, s1, b1, w2, s2, b2):
    def one(u, kxyz, uf, kf):
        n = u.shape[0]
        d2 = jnp.sum((u[:, None, :] - kxyz[None, :, :]) ** 2, axis=-1)  # (n, m)
        remaining = d2
        idxs, dists = [], []
        for _ in range(3):
            j = jnp.argmin(remaining, axis=1)          # first min = smallest idx
            dj = jnp.take_along_axis(d2, j[:, None], axis=1)[:, 0]
            idxs.append(j)
            dists.append(jnp.sqrt(dj))
            remaining = remaining.at[jnp.arange(n), j].set(jnp.inf)
        dist = jnp.stack(dists, axis=1)                # (n, 3)
        idx = jnp.stack(idxs, axis=1)                  # (n, 3)
        recip = 1.0 / (dist + 1e-8)
        weight = recip / jnp.sum(recip, axis=1, keepdims=True)
        interp = jnp.sum(kf[:, idx] * weight[None, :, :], axis=-1)      # (C2, n)
        feats = jnp.concatenate([interp, uf], axis=0)
        h = jnp.maximum(s1 * (w1 @ feats) + b1, 0.0)
        return jnp.maximum(s2 * (w2 @ h) + b2, 0.0)

    return jax.vmap(one)(unknown, known, unknow_feats, known_feats)


# ----------------------------------------------------------------------------
# Main
# ----------------------------------------------------------------------------
if __name__ == "__main__":
    B, n, m = 2, 128, 64
    C1, C2 = 4, 12
    mlp = [C1 + C2, 32, 16]          # mlp[0] must equal C2 + C1

    key = jax.random.PRNGKey(0)
    keys = jax.random.split(key, 10)

    unknown = jax.random.uniform(keys[0], (B, n, 3), jnp.float32) * 4.0
    known = jax.random.uniform(keys[1], (B, m, 3), jnp.float32) * 4.0
    unknow_feats = jax.random.normal(keys[2], (B, C1, n), jnp.float32)
    known_feats = jax.random.normal(keys[3], (B, C2, m), jnp.float32)

    # Conv2d(kernel_size=1, bias=False) weights -> (Cout, Cin)
    w1 = jax.random.normal(keys[4], (mlp[1], mlp[0]), jnp.float32) * 0.1
    w2 = jax.random.normal(keys[5], (mlp[2], mlp[1]), jnp.float32) * 0.1

    # BatchNorm2d folded to affine (inference: running_mean=0, running_var=1)
    eps = 1e-5
    g1 = 1.0 + 0.1 * jax.random.normal(keys[6], (mlp[1],), jnp.float32)
    be1 = 0.1 * jax.random.normal(keys[7], (mlp[1],), jnp.float32)
    g2 = 1.0 + 0.1 * jax.random.normal(keys[8], (mlp[2],), jnp.float32)
    be2 = 0.1 * jax.random.normal(keys[9], (mlp[2],), jnp.float32)
    s1 = (g1 / jnp.sqrt(1.0 + eps)).reshape(-1, 1)
    b1 = be1.reshape(-1, 1)
    s2 = (g2 / jnp.sqrt(1.0 + eps)).reshape(-1, 1)
    b2 = be2.reshape(-1, 1)

    out = pointnet_fp_forward(unknown, known, unknow_feats, known_feats,
                              w1, s1, b1, w2, s2, b2)
    out = jax.block_until_ready(out)

    ref = reference_forward(unknown, known, unknow_feats, known_feats,
                            w1, s1, b1, w2, s2, b2)
    ref = jax.block_until_ready(ref)

    assert out.shape == (B, mlp[-1], n), out.shape
    # bf16 MXU path + approx reciprocals => loosened tolerance vs the f32 ref.
    np.testing.assert_allclose(np.asarray(out), np.asarray(ref),
                               rtol=3e-2, atol=3e-2)
    print("KERNEL_OK")
</pallas_src>

<mosaic_0001>
module attributes {stable_mosaic.version = 11 : i64} {
  func.func @_fp_kernel(%arg0: i32, %arg1: i32, %arg2: memref<1x3x128xf32, #tpu.memory_space<vmem>>, %arg3: memref<1x8x64xf32, #tpu.memory_space<vmem>>, %arg4: memref<1x4x128xbf16, #tpu.memory_space<vmem>>, %arg5: memref<1x12x64xbf16, #tpu.memory_space<vmem>>, %arg6: memref<32x12xbf16, #tpu.memory_space<vmem>>, %arg7: memref<32x4xbf16, #tpu.memory_space<vmem>>, %arg8: memref<32x1xf32, #tpu.memory_space<vmem>>, %arg9: memref<16x32xbf16, #tpu.memory_space<vmem>>, %arg10: memref<16x1xf32, #tpu.memory_space<vmem>>, %arg11: memref<1x16x128xf32, #tpu.memory_space<vmem>>) attributes {dimension_semantics = [#tpu.dimension_semantics<parallel>, #tpu.dimension_semantics<parallel>], iteration_bounds = array<i64: 2, 1>, scalar_prefetch = 0 : i64, scratch_operands = 0 : i64, tpu.core_type = #tpu.core_type<tc>, window_params = [{transform_indices = @transform_0, window_bounds = array<i64: 1, 3, 128>}, {transform_indices = @transform_1, window_bounds = array<i64: 1, 8, 64>}, {transform_indices = @transform_2, window_bounds = array<i64: 1, 4, 128>}, {transform_indices = @transform_3, window_bounds = array<i64: 1, 12, 64>}, {pipeline_mode = #tpu.pipeline_mode<synchronous>, transform_indices = @transform_4, window_bounds = array<i64: 32, 12>}, {pipeline_mode = #tpu.pipeline_mode<synchronous>, transform_indices = @transform_5, window_bounds = array<i64: 32, 4>}, {pipeline_mode = #tpu.pipeline_mode<synchronous>, transform_indices = @transform_6, window_bounds = array<i64: 32, 1>}, {pipeline_mode = #tpu.pipeline_mode<synchronous>, transform_indices = @transform_7, window_bounds = array<i64: 16, 32>}, {pipeline_mode = #tpu.pipeline_mode<synchronous>, transform_indices = @transform_8, window_bounds = array<i64: 16, 1>}, {transform_indices = @transform_9, window_bounds = array<i64: 1, 16, 128>}]} {
    %0 = tpu.iota {dimensions = array<i32: 0>} : vector<64x128xi32>
    %c0 = arith.constant 0 : index
    %c0_0 = arith.constant 0 : index
    %1 = vector.load %arg6[%c0, %c0_0] : memref<32x12xbf16, #tpu.memory_space<vmem>>, vector<32x12xbf16>
    %c0_1 = arith.constant 0 : index
    %c0_2 = arith.constant 0 : index
    %2 = vector.load %arg7[%c0_1, %c0_2] : memref<32x4xbf16, #tpu.memory_space<vmem>>, vector<32x4xbf16>
    %c0_3 = arith.constant 0 : index
    %c0_4 = arith.constant 0 : index
    %3 = vector.load %arg8[%c0_3, %c0_4] : memref<32x1xf32, #tpu.memory_space<vmem>>, vector<32x1xf32>
    %c0_5 = arith.constant 0 : index
    %c0_6 = arith.constant 0 : index
    %4 = vector.load %arg9[%c0_5, %c0_6] : memref<16x32xbf16, #tpu.memory_space<vmem>>, vector<16x32xbf16>
    %c0_7 = arith.constant 0 : index
    %c0_8 = arith.constant 0 : index
    %5 = vector.load %arg10[%c0_7, %c0_8] : memref<16x1xf32, #tpu.memory_space<vmem>>, vector<16x1xf32>
    %c0_9 = arith.constant 0 : index
    %c0_10 = arith.constant 0 : index
    %c0_11 = arith.constant 0 : index
    %6 = vector.load %arg2[%c0_9, %c0_10, %c0_11] : memref<1x3x128xf32, #tpu.memory_space<vmem>>, vector<1x3x128xf32>
    %7 = vector.shape_cast %6 : vector<1x3x128xf32> to vector<3x128xf32>
    %c0_12 = arith.constant 0 : index
    %c0_13 = arith.constant 0 : index
    %c0_14 = arith.constant 0 : index
    %8 = vector.load %arg3[%c0_12, %c0_13, %c0_14] : memref<1x8x64xf32, #tpu.memory_space<vmem>>, vector<1x8x64xf32>
    %9 = vector.shape_cast %8 : vector<1x8x64xf32> to vector<8x64xf32>
    %10 = tpu.transpose %9, [1, 0] : vector<8x64xf32> -> vector<64x8xf32>
    %c0_15 = arith.constant 0 : index
    %c0_16 = arith.constant 0 : index
    %c0_17 = arith.constant 0 : index
    %11 = vector.load %arg5[%c0_15, %c0_16, %c0_17] : memref<1x12x64xbf16, #tpu.memory_space<vmem>>, vector<1x12x64xbf16>
    %12 = vector.shape_cast %11 : vector<1x12x64xbf16> to vector<12x64xbf16>
    %13 = vector.extract_strided_slice %10 {offsets = [0, 0], sizes = [64, 1], strides = [1, 1]} : vector<64x8xf32> to vector<64x1xf32>
    %14 = vector.extract_strided_slice %7 {offsets = [0, 0], sizes = [1, 128], strides = [1, 1]} : vector<3x128xf32> to vector<1x128xf32>
    %15 = vector.broadcast %13 : vector<64x1xf32> to vector<64x128xf32>
    %16 = vector.broadcast %14 : vector<1x128xf32> to vector<64x128xf32>
    %17 = arith.subf %15, %16 : vector<64x128xf32>
    %18 = arith.mulf %17, %17 : vector<64x128xf32>
    %19 = vector.extract_strided_slice %10 {offsets = [0, 1], sizes = [64, 1], strides = [1, 1]} : vector<64x8xf32> to vector<64x1xf32>
    %20 = vector.extract_strided_slice %7 {offsets = [1, 0], sizes = [1, 128], strides = [1, 1]} : vector<3x128xf32> to vector<1x128xf32>
    %21 = vector.broadcast %19 : vector<64x1xf32> to vector<64x128xf32>
    %22 = vector.broadcast %20 : vector<1x128xf32> to vector<64x128xf32>
    %23 = arith.subf %21, %22 : vector<64x128xf32>
    %24 = arith.mulf %23, %23 : vector<64x128xf32>
    %25 = arith.addf %18, %24 : vector<64x128xf32>
    %26 = vector.extract_strided_slice %10 {offsets = [0, 2], sizes = [64, 1], strides = [1, 1]} : vector<64x8xf32> to vector<64x1xf32>
    %27 = vector.extract_strided_slice %7 {offsets = [2, 0], sizes = [1, 128], strides = [1, 1]} : vector<3x128xf32> to vector<1x128xf32>
    %28 = vector.broadcast %26 : vector<64x1xf32> to vector<64x128xf32>
    %29 = vector.broadcast %27 : vector<1x128xf32> to vector<64x128xf32>
    %30 = arith.subf %28, %29 : vector<64x128xf32>
    %31 = arith.mulf %30, %30 : vector<64x128xf32>
    %32 = arith.addf %25, %31 : vector<64x128xf32>
    %cst = arith.constant dense<0x7F800000> : vector<128xf32>
    %33 = vector.multi_reduction <minimumf>, %32, %cst [0] : vector<64x128xf32> to vector<128xf32>
    %34 = vector.shape_cast %33 : vector<128xf32> to vector<1x128xf32>
    %35 = vector.broadcast %34 : vector<1x128xf32> to vector<64x128xf32>
    %36 = arith.cmpf ole, %32, %35 : vector<64x128xf32>
    %c64_i32 = arith.constant 64 : i32
    %37 = vector.broadcast %c64_i32 : i32 to vector<64x128xi32>
    %38 = arith.select %36, %0, %37 : vector<64x128xi1>, vector<64x128xi32>
    %cst_18 = arith.constant dense<2147483647> : vector<128xi32>
    %39 = vector.multi_reduction <minsi>, %38, %cst_18 [0] : vector<64x128xi32> to vector<128xi32>
    %40 = vector.shape_cast %39 : vector<128xi32> to vector<1x128xi32>
    %41 = vector.broadcast %40 : vector<1x128xi32> to vector<64x128xi32>
    %42 = arith.cmpi eq, %0, %41 : vector<64x128xi32>
    %cst_19 = arith.constant 0.000000e+00 : f32
    %43 = vector.broadcast %cst_19 : f32 to vector<1x128xf32>
    %44 = arith.maximumf %34, %43 : vector<1x128xf32>
    %45 = math.sqrt %44 : vector<1x128xf32>
    %cst_20 = arith.constant 9.99999993E-9 : f32
    %46 = vector.broadcast %cst_20 : f32 to vector<1x128xf32>
    %47 = arith.addf %45, %46 : vector<1x128xf32>
    %48 = tpu.reciprocal %47 {approx = true} : vector<1x128xf32> -> vector<1x128xf32>
    %cst_21 = arith.constant 0.000000e+00 : f32
    %49 = vector.shape_cast %48 : vector<1x128xf32> to vector<1x128xf32>
    %50 = vector.broadcast %49 : vector<1x128xf32> to vector<64x128xf32>
    %51 = vector.broadcast %cst_21 : f32 to vector<64x128xf32>
    %52 = arith.select %42, %50, %51 : vector<64x128xi1>, vector<64x128xf32>
    %cst_22 = arith.constant 1.000000e+30 : f32
    %53 = vector.broadcast %cst_22 : f32 to vector<64x128xf32>
    %54 = arith.select %42, %53, %32 : vector<64x128xi1>, vector<64x128xf32>
    %cst_23 = arith.constant dense<0x7F800000> : vector<128xf32>
    %55 = vector.multi_reduction <minimumf>, %54, %cst_23 [0] : vector<64x128xf32> to vector<128xf32>
    %56 = vector.shape_cast %55 : vector<128xf32> to vector<1x128xf32>
    %57 = vector.broadcast %56 : vector<1x128xf32> to vector<64x128xf32>
    %58 = arith.cmpf ole, %54, %57 : vector<64x128xf32>
    %c64_i32_24 = arith.constant 64 : i32
    %59 = vector.broadcast %c64_i32_24 : i32 to vector<64x128xi32>
    %60 = arith.select %58, %0, %59 : vector<64x128xi1>, vector<64x128xi32>
    %cst_25 = arith.constant dense<2147483647> : vector<128xi32>
    %61 = vector.multi_reduction <minsi>, %60, %cst_25 [0] : vector<64x128xi32> to vector<128xi32>
    %62 = vector.shape_cast %61 : vector<128xi32> to vector<1x128xi32>
    %63 = vector.broadcast %62 : vector<1x128xi32> to vector<64x128xi32>
    %64 = arith.cmpi eq, %0, %63 : vector<64x128xi32>
    %cst_26 = arith.constant 0.000000e+00 : f32
    %65 = vector.broadcast %cst_26 : f32 to vector<1x128xf32>
    %66 = arith.maximumf %56, %65 : vector<1x128xf32>
    %67 = math.sqrt %66 : vector<1x128xf32>
    %cst_27 = arith.constant 9.99999993E-9 : f32
    %68 = vector.broadcast %cst_27 : f32 to vector<1x128xf32>
    %69 = arith.addf %67, %68 : vector<1x128xf32>
    %70 = tpu.reciprocal %69 {approx = true} : vector<1x128xf32> -> vector<1x128xf32>
    %cst_28 = arith.constant 0.000000e+00 : f32
    %71 = vector.shape_cast %70 : vector<1x128xf32> to vector<1x128xf32>
    %72 = vector.broadcast %71 : vector<1x128xf32> to vector<64x128xf32>
    %73 = vector.broadcast %cst_28 : f32 to vector<64x128xf32>
    %74 = arith.select %64, %72, %73 : vector<64x128xi1>, vector<64x128xf32>
    %75 = arith.addf %52, %74 : vector<64x128xf32>
    %76 = arith.addf %48, %70 : vector<1x128xf32>
    %cst_29 = arith.constant 1.000000e+30 : f32
    %77 = vector.broadcast %cst_29 : f32 to vector<64x128xf32>
    %78 = arith.select %64, %77, %54 : vector<64x128xi1>, vector<64x128xf32>
    %cst_30 = arith.constant dense<0x7F800000> : vector<128xf32>
    %79 = vector.multi_reduction <minimumf>, %78, %cst_30 [0] : vector<64x128xf32> to vector<128xf32>
    %80 = vector.shape_cast %79 : vector<128xf32> to vector<1x128xf32>
    %81 = vector.broadcast %80 : vector<1x128xf32> to vector<64x128xf32>
    %82 = arith.cmpf ole, %78, %81 : vector<64x128xf32>
    %c64_i32_31 = arith.constant 64 : i32
    %83 = vector.broadcast %c64_i32_31 : i32 to vector<64x128xi32>
    %84 = arith.select %82, %0, %83 : vector<64x128xi1>, vector<64x128xi32>
    %cst_32 = arith.constant dense<2147483647> : vector<128xi32>
    %85 = vector.multi_reduction <minsi>, %84, %cst_32 [0] : vector<64x128xi32> to vector<128xi32>
    %86 = vector.shape_cast %85 : vector<128xi32> to vector<1x128xi32>
    %87 = vector.broadcast %86 : vector<1x128xi32> to vector<64x128xi32>
    %88 = arith.cmpi eq, %0, %87 : vector<64x128xi32>
    %cst_33 = arith.constant 0.000000e+00 : f32
    %89 = vector.broadcast %cst_33 : f32 to vector<1x128xf32>
    %90 = arith.maximumf %80, %89 : vector<1x128xf32>
    %91 = math.sqrt %90 : vector<1x128xf32>
    %cst_34 = arith.constant 9.99999993E-9 : f32
    %92 = vector.broadcast %cst_34 : f32 to vector<1x128xf32>
    %93 = arith.addf %91, %92 : vector<1x128xf32>
    %94 = tpu.reciprocal %93 {approx = true} : vector<1x128xf32> -> vector<1x128xf32>
    %cst_35 = arith.constant 0.000000e+00 : f32
    %95 = vector.shape_cast %94 : vector<1x128xf32> to vector<1x128xf32>
    %96 = vector.broadcast %95 : vector<1x128xf32> to vector<64x128xf32>
    %97 = vector.broadcast %cst_35 : f32 to vector<64x128xf32>
    %98 = arith.select %88, %96, %97 : vector<64x128xi1>, vector<64x128xf32>
    %99 = arith.addf %75, %98 : vector<64x128xf32>
    %100 = arith.addf %76, %94 : vector<1x128xf32>
    %101 = arith.truncf %99 : vector<64x128xf32> to vector<64x128xbf16>
    %cst_36 = arith.constant dense<0.000000e+00> : vector<12x128xf32>
    %102 = tpu.matmul %12, %101, %cst_36 {dimension_numbers = #tpu.dot_dimension_numbers<[1], [0], [0], [1], [0, 0, 1, 1], [], []>} : vector<12x64xbf16>, vector<64x128xbf16>, vector<12x128xf32> -> vector<12x128xf32>
    %103 = tpu.reciprocal %100 {approx = true} : vector<1x128xf32> -> vector<1x128xf32>
    %104 = vector.broadcast %103 : vector<1x128xf32> to vector<12x128xf32>
    %105 = arith.mulf %102, %104 : vector<12x128xf32>
    %106 = arith.truncf %105 : vector<12x128xf32> to vector<12x128xbf16>
    %cst_37 = arith.constant dense<0.000000e+00> : vector<32x128xf32>
    %107 = tpu.matmul %1, %106, %cst_37 {dimension_numbers = #tpu.dot_dimension_numbers<[1], [0], [0], [1], [0, 0, 1, 1], [], []>} : vector<32x12xbf16>, vector<12x128xbf16>, vector<32x128xf32> -> vector<32x128xf32>
    %c0_38 = arith.constant 0 : index
    %c0_39 = arith.constant 0 : index
    %c0_40 = arith.constant 0 : index
    %108 = vector.load %arg4[%c0_38, %c0_39, %c0_40] : memref<1x4x128xbf16, #tpu.memory_space<vmem>>, vector<1x4x128xbf16>
    %109 = vector.shape_cast %108 : vector<1x4x128xbf16> to vector<4x128xbf16>
    %cst_41 = arith.constant dense<0.000000e+00> : vector<32x128xf32>
    %110 = tpu.matmul %2, %109, %cst_41 {dimension_numbers = #tpu.dot_dimension_numbers<[1], [0], [0], [1], [0, 0, 1, 1], [], []>} : vector<32x4xbf16>, vector<4x128xbf16>, vector<32x128xf32> -> vector<32x128xf32>
    %111 = arith.addf %107, %110 : vector<32x128xf32>
    %112 = vector.broadcast %3 : vector<32x1xf32> to vector<32x128xf32>
    %113 = arith.addf %111, %112 : vector<32x128xf32>
    %cst_42 = arith.constant 0.000000e+00 : f32
    %114 = vector.broadcast %cst_42 : f32 to vector<32x128xf32>
    %115 = arith.maximumf %113, %114 : vector<32x128xf32>
    %116 = arith.truncf %115 : vector<32x128xf32> to vector<32x128xbf16>
    %cst_43 = arith.constant dense<0.000000e+00> : vector<16x128xf32>
    %117 = tpu.matmul %4, %116, %cst_43 {dimension_numbers = #tpu.dot_dimension_numbers<[1], [0], [0], [1], [0, 0, 1, 1], [], []>} : vector<16x32xbf16>, vector<32x128xbf16>, vector<16x128xf32> -> vector<16x128xf32>
    %118 = vector.broadcast %5 : vector<16x1xf32> to vector<16x128xf32>
    %119 = arith.addf %117, %118 : vector<16x128xf32>
    %cst_44 = arith.constant 0.000000e+00 : f32
    %120 = vector.broadcast %cst_44 : f32 to vector<16x128xf32>
    %121 = arith.maximumf %119, %120 : vector<16x128xf32>
    %c0_45 = arith.constant 0 : index
    %c0_46 = arith.constant 0 : index
    %c0_47 = arith.constant 0 : index
    %122 = vector.load %arg11[%c0_45, %c0_46, %c0_47] : memref<1x16x128xf32, #tpu.memory_space<vmem>>, vector<1x16x128xf32>
    %123 = vector.shape_cast %122 : vector<1x16x128xf32> to vector<16x128xf32>
    %124 = vector.shape_cast %121 : vector<16x128xf32> to vector<1x16x128xf32>
    tpu.vector_store %arg11[%c0_45, %c0_46, %c0_47], %124 {strides = array<i32>} : memref<1x16x128xf32, #tpu.memory_space<vmem>>, vector<1x16x128xf32>,
    return
  }
  func.func @transform_0(%arg0: i32, %arg1: i32) -> (i32, i32, i32) {
    %c0_i32 = arith.constant 0 : i32
    %c0_i32_0 = arith.constant 0 : i32
    return %arg0, %c0_i32, %arg1 : i32, i32, i32
  }
  func.func @transform_1(%arg0: i32, %arg1: i32) -> (i32, i32, i32) {
    %c0_i32 = arith.constant 0 : i32
    %c0_i32_0 = arith.constant 0 : i32
    %c0_i32_1 = arith.constant 0 : i32
    return %arg0, %c0_i32, %c0_i32_0 : i32, i32, i32
  }
  func.func @transform_2(%arg0: i32, %arg1: i32) -> (i32, i32, i32) {
    %c0_i32 = arith.constant 0 : i32
    %c0_i32_0 = arith.constant 0 : i32
    return %arg0, %c0_i32, %arg1 : i32, i32, i32
  }
  func.func @transform_3(%arg0: i32, %arg1: i32) -> (i32, i32, i32) {
    %c0_i32 = arith.constant 0 : i32
    %c0_i32_0 = arith.constant 0 : i32
    %c0_i32_1 = arith.constant 0 : i32
    return %arg0, %c0_i32, %c0_i32_0 : i32, i32, i32
  }
  func.func @transform_4(%arg0: i32, %arg1: i32) -> (i32, i32) {
    %c0_i32 = arith.constant 0 : i32
    %c0_i32_0 = arith.constant 0 : i32
    %c0_i32_1 = arith.constant 0 : i32
    return %c0_i32, %c0_i32_0 : i32, i32
  }
  func.func @transform_5(%arg0: i32, %arg1: i32) -> (i32, i32) {
    %c0_i32 = arith.constant 0 : i32
    %c0_i32_0 = arith.constant 0 : i32
    %c0_i32_1 = arith.constant 0 : i32
    return %c0_i32, %c0_i32_0 : i32, i32
  }
  func.func @transform_6(%arg0: i32, %arg1: i32) -> (i32, i32) {
    %c0_i32 = arith.constant 0 : i32
    %c0_i32_0 = arith.constant 0 : i32
    %c0_i32_1 = arith.constant 0 : i32
    return %c0_i32, %c0_i32_0 : i32, i32
  }
  func.func @transform_7(%arg0: i32, %arg1: i32) -> (i32, i32) {
    %c0_i32 = arith.constant 0 : i32
    %c0_i32_0 = arith.constant 0 : i32
    %c0_i32_1 = arith.constant 0 : i32
    return %c0_i32, %c0_i32_0 : i32, i32
  }
  func.func @transform_8(%arg0: i32, %arg1: i32) -> (i32, i32) {
    %c0_i32 = arith.constant 0 : i32
    %c0_i32_0 = arith.constant 0 : i32
    %c0_i32_1 = arith.constant 0 : i32
    return %c0_i32, %c0_i32_0 : i32, i32
  }
  func.func @transform_9(%arg0: i32, %arg1: i32) -> (i32, i32, i32) {
    %c0_i32 = arith.constant 0 : i32
    %c0_i32_0 = arith.constant 0 : i32
    return %arg0, %c0_i32, %arg1 : i32, i32, i32
  }
}

</mosaic_0001>

<llo_original>
// kernel: pointnet_fp_forward.1
$region0: #{pointnet_fp_forward.1}
  #allocation0 [shape = 'u32[]', space=smem, size = 0x4, offset = 0x4, fixed_abs, tag = 'smem constant byte address 0x4 - core index']
  #allocation1 [shape = 'u32[144,128]{1,0:T(1,128)}', space=vmem, size = 0x12000, scoped, tag = 'internal scratch']
  %s0 = inlined_call_operand.vmem [shape: f32[2,3,128], index: 0, kind: input, shape index: {}]
  %s1 = inlined_call_operand.vmem [shape: f32[2,8,64], index: 1, kind: input, shape index: {}]
  %s2 = inlined_call_operand.vmem [shape: bf16[2,4,128], index: 2, kind: input, shape index: {}]
  %s3 = inlined_call_operand.vmem [shape: bf16[2,12,64], index: 3, kind: input, shape index: {}]
  %s4 = inlined_call_operand.vmem [shape: bf16[32,12], index: 4, kind: input, shape index: {}]
  %s5 = inlined_call_operand.vmem [shape: bf16[32,4], index: 5, kind: input, shape index: {}]
  %s6 = inlined_call_operand.vmem [shape: f32[32,1], index: 6, kind: input, shape index: {}]
  %s7 = inlined_call_operand.vmem [shape: bf16[16,32], index: 7, kind: input, shape index: {}]
  %s8 = inlined_call_operand.vmem [shape: f32[16,1], index: 8, kind: input, shape index: {}]
  %s9 = inlined_call_operand.hbm [shape: f32[2,16,128], index: 9, kind: output, shape index: {}]
  %s10 = sld [smem:[#allocation0]]
  $region69: #{pointnet_fp_forward.1} parent=0
    _
  %s12 = ssub.s32 1, %s10
  %s13 = scalar_select 0, %s12, %s10
  $region1: #{pointnet_fp_forward.1} parent=0
    #allocation2 [shape = 'u8[16384]{0}', space=vmem, size = 0x4000, scoped, tag = 'output window, operand 0']
    #allocation3 [shape = 's32[2]{0}', space=sflag, size = 0x8, scoped, tag = 'scoped memory for pointnet_fp_forward.1']
    %14 = vsyncpa [#allocation3], 0
    %s15 = scalar_lea.sflag [#allocation3], 1
    %16 = vsyncpa %s15, 0
    loop: start=0, step=1, limit=4
    $region2: #{pointnet_fp_forward.1} parent=1 // loop_pre_header
      _
    $region3: #{pointnet_fp_forward.1} parent=1 // loop_header
      %s18 = sphi 0, %s22
      %p19 = scmp.ge.s32.totalorder %s18, 4
      %s25 = sphi 0, %s37
      %s26 = sphi 0, %s33
      %s27 = sphi 0, %s25
      %s28 = sphi 0, %s26
      %s29 = sphi 0, %s27
      %s30 = sphi 0, %s28
      %s42 = sphi 0, %s44
      %s45 = sphi 0, %s42
      %s46 = sphi 0, %s45
      %s62 = sphi 0, %s46
      %s68 = sphi 0, %s70
      %s71 = sphi 0, %s68
      %s72 = sphi 0, %s71
      %s88 = sphi 0, %s72
      %s96 = sphi 0, %s98
      %s99 = sphi 0, %s96
      %s100 = sphi 0, %s99
      %s116 = sphi 0, %s100
      %s122 = sphi 0, %s124
      %s125 = sphi 0, %s122
      %s126 = sphi 0, %s125
      %s142 = sphi 0, %s126
      %s146 = sphi 0, %s146
      %s148 = sphi 0, %s146
      %s149 = sphi 0, %s148
      %s163 = sphi 0, %s149
      %s167 = sphi 0, %s167
      %s169 = sphi 0, %s167
      %s170 = sphi 0, %s169
      %s184 = sphi 0, %s170
      %s188 = sphi 0, %s188
      %s190 = sphi 0, %s188
      %s191 = sphi 0, %s190
      %s205 = sphi 0, %s191
      %s209 = sphi 0, %s209
      %s211 = sphi 0, %s209
      %s212 = sphi 0, %s211
      %s226 = sphi 0, %s212
      %s230 = sphi 0, %s230
      %s232 = sphi 0, %s230
      %s233 = sphi 0, %s232
      %s247 = sphi 0, %s233
      %s255 = sphi 0, %s257
      %s258 = sphi 0, %s255
      %s259 = sphi 0, %s258
      %s275 = sphi 0, %s259
    $region4: #{pointnet_fp_forward.1} parent=1 // loop_header_branch
      %21 = sbr.rel (%p19) target = $region8
    $region5: #{pointnet_fp_forward.1} parent=1 // loop_body
      %s23 = ssub.s32 %s18, 1
      %s24 = ssub.s32 %s18, 2
      %s31 = sadd.s32 1, %s26
      %p32 = scmp.ge.s32.totalorder %s31, 1
      %s33 = scalar_select %p32, 0, %s31
      %s34 = sadd.s32 1, %s25
      %s35 = scalar_select %p32, %s34, %s25
      %p36 = scmp.ge.s32.totalorder %s35, 2
      %s37 = scalar_select %p36, 0, %s35
      %s38 = ssub.s32 %s25, %s37
      %s39 = ssub.s32 %s26, %s33
      %s40 = sor.u32 %s38, %s39
      %p41 = scmp.eq.s32.totalorder %s40, 0
      %s43 = sadd.s32 %s42, 1
      %s44 = scalar_select %p41, %s42, %s43
      %p47 = pneg %p41
      %p48 = scmp.eq.s32.totalorder %s18, 1
      %p49 = por %p47, %p48
      %p50 = scmp.ne.s32.totalorder %s42, %s45
      %p51 = scmp.eq.s32.totalorder %s18, 0
      %p52 = por %p50, %p51
      %p53 = scmp.ne.s32.totalorder %s42, %s45
      %p54 = scmp.eq.s32.totalorder %s23, 1
      %p55 = por %p53, %p54
      %p56 = scmp.ne.s32.totalorder %s45, %s46
      %p57 = scmp.eq.s32.totalorder %s23, 0
      %p58 = por %p56, %p57
      %p59 = scmp.ne.s32.totalorder %s45, %s46
      %p60 = scmp.eq.s32.totalorder %s24, 1
      %p61 = por %p59, %p60
      %p63 = scmp.ne.s32.totalorder %s46, %s62
      %p64 = scmp.eq.s32.totalorder %s24, 0
      %p65 = por %p63, %p64
      %s66 = ssub.s32 %s25, %s37
      %p67 = scmp.eq.s32.totalorder %s66, 0
      %s69 = sadd.s32 %s68, 1
      %s70 = scalar_select %p67, %s68, %s69
      %p73 = pneg %p67
      %p74 = scmp.eq.s32.totalorder %s18, 1
      %p75 = por %p73, %p74
      %p76 = scmp.ne.s32.totalorder %s68, %s71
      %p77 = scmp.eq.s32.totalorder %s18, 0
      %p78 = por %p76, %p77
      %p79 = scmp.ne.s32.totalorder %s68, %s71
      %p80 = scmp.eq.s32.totalorder %s23, 1
      %p81 = por %p79, %p80
      %p82 = scmp.ne.s32.totalorder %s71, %s72
      %p83 = scmp.eq.s32.totalorder %s23, 0
      %p84 = por %p82, %p83
      %p85 = scmp.ne.s32.totalorder %s71, %s72
      %p86 = scmp.eq.s32.totalorder %s24, 1
      %p87 = por %p85, %p86
      %p89 = scmp.ne.s32.totalorder %s72, %s88
      %p90 = scmp.eq.s32.totalorder %s24, 0
      %p91 = por %p89, %p90
      %s92 = ssub.s32 %s25, %s37
      %s93 = ssub.s32 %s26, %s33
      %s94 = sor.u32 %s92, %s93
      %p95 = scmp.eq.s32.totalorder %s94, 0
      %s97 = sadd.s32 %s96, 1
      %s98 = scalar_select %p95, %s96, %s97
      %p101 = pneg %p95
      %p102 = scmp.eq.s32.totalorder %s18, 1
      %p103 = por %p101, %p102
      %p104 = scmp.ne.s32.totalorder %s96, %s99
      %p105 = scmp.eq.s32.totalorder %s18, 0
      %p106 = por %p104, %p105
      %p107 = scmp.ne.s32.totalorder %s96, %s99
      %p108 = scmp.eq.s32.totalorder %s23, 1
      %p109 = por %p107, %p108
      %p110 = scmp.ne.s32.totalorder %s99, %s100
      %p111 = scmp.eq.s32.totalorder %s23, 0
      %p112 = por %p110, %p111
      %p113 = scmp.ne.s32.totalorder %s99, %s100
      %p114 = scmp.eq.s32.totalorder %s24, 1
      %p115 = por %p113, %p114
      %p117 = scmp.ne.s32.totalorder %s100, %s116
      %p118 = scmp.eq.s32.totalorder %s24, 0
      %p119 = por %p117, %p118
      %s120 = ssub.s32 %s25, %s37
      %p121 = scmp.eq.s32.totalorder %s120, 0
      %s123 = sadd.s32 %s122, 1
      %s124 = scalar_select %p121, %s122, %s123
      %p127 = pneg %p121
      %p128 = scmp.eq.s32.totalorder %s18, 1
      %p129 = por %p127, %p128
      %p130 = scmp.ne.s32.totalorder %s122, %s125
      %p131 = scmp.eq.s32.totalorder %s18, 0
      %p132 = por %p130, %p131
      %p133 = scmp.ne.s32.totalorder %s122, %s125
      %p134 = scmp.eq.s32.totalorder %s23, 1
      %p135 = por %p133, %p134
      %p136 = scmp.ne.s32.totalorder %s125, %s126
      %p137 = scmp.eq.s32.totalorder %s23, 0
      %p138 = por %p136, %p137
      %p139 = scmp.ne.s32.totalorder %s125, %s126
      %p140 = scmp.eq.s32.totalorder %s24, 1
      %p141 = por %p139, %p140
      %p143 = scmp.ne.s32.totalorder %s126, %s142
      %p144 = scmp.eq.s32.totalorder %s24, 0
      %p145 = por %p143, %p144
      %s147 = sadd.s32 %s146, 1
      %p150 = scmp.eq.s32.totalorder %s18, 1
      %p151 = scmp.ne.s32.totalorder %s146, %s148
      %p152 = scmp.eq.s32.totalorder %s18, 0
      %p153 = por %p151, %p152
      %p154 = scmp.ne.s32.totalorder %s146, %s148
      %p155 = scmp.eq.s32.totalorder %s23, 1
      %p156 = por %p154, %p155
      %p157 = scmp.ne.s32.totalorder %s148, %s149
      %p158 = scmp.eq.s32.totalorder %s23, 0
      %p159 = por %p157, %p158
      %p160 = scmp.ne.s32.totalorder %s148, %s149
      %p161 = scmp.eq.s32.totalorder %s24, 1
      %p162 = por %p160, %p161
      %p164 = scmp.ne.s32.totalorder %s149, %s163
      %p165 = scmp.eq.s32.totalorder %s24, 0
      %p166 = por %p164, %p165
      %s168 = sadd.s32 %s167, 1
      %p171 = scmp.eq.s32.totalorder %s18, 1
      %p172 = scmp.ne.s32.totalorder %s167, %s169
      %p173 = scmp.eq.s32.totalorder %s18, 0
      %p174 = por %p172, %p173
      %p175 = scmp.ne.s32.totalorder %s167, %s169
      %p176 = scmp.eq.s32.totalorder %s23, 1
      %p177 = por %p175, %p176
      %p178 = scmp.ne.s32.totalorder %s169, %s170
      %p179 = scmp.eq.s32.totalorder %s23, 0
      %p180 = por %p178, %p179
      %p181 = scmp.ne.s32.totalorder %s169, %s170
      %p182 = scmp.eq.s32.totalorder %s24, 1
      %p183 = por %p181, %p182
      %p185 = scmp.ne.s32.totalorder %s170, %s184
      %p186 = scmp.eq.s32.totalorder %s24, 0
      %p187 = por %p185, %p186
      %s189 = sadd.s32 %s188, 1
      %p192 = scmp.eq.s32.totalorder %s18, 1
      %p193 = scmp.ne.s32.totalorder %s188, %s190
      %p194 = scmp.eq.s32.totalorder %s18, 0
      %p195 = por %p193, %p194
      %p196 = scmp.ne.s32.totalorder %s188, %s190
      %p197 = scmp.eq.s32.totalorder %s23, 1
      %p198 = por %p196, %p197
      %p199 = scmp.ne.s32.totalorder %s190, %s191
      %p200 = scmp.eq.s32.totalorder %s23, 0
      %p201 = por %p199, %p200
      %p202 = scmp.ne.s32.totalorder %s190, %s191
      %p203 = scmp.eq.s32.totalorder %s24, 1
      %p204 = por %p202, %p203
      %p206 = scmp.ne.s32.totalorder %s191, %s205
      %p207 = scmp.eq.s32.totalorder %s24, 0
      %p208 = por %p206, %p207
      %s210 = sadd.s32 %s209, 1
      %p213 = scmp.eq.s32.totalorder %s18, 1
      %p214 = scmp.ne.s32.totalorder %s209, %s211
      %p215 = scmp.eq.s32.totalorder %s18, 0
      %p216 = por %p214, %p215
      %p217 = scmp.ne.s32.totalorder %s209, %s211
      %p218 = scmp.eq.s32.totalorder %s23, 1
      %p219 = por %p217, %p218
      %p220 = scmp.ne.s32.totalorder %s211, %s212
      %p221 = scmp.eq.s32.totalorder %s23, 0
      %p222 = por %p220, %p221
      %p223 = scmp.ne.s32.totalorder %s211, %s212
      %p224 = scmp.eq.s32.totalorder %s24, 1
      %p225 = por %p223, %p224
      %p227 = scmp.ne.s32.totalorder %s212, %s226
      %p228 = scmp.eq.s32.totalorder %s24, 0
      %p229 = por %p227, %p228
      %s231 = sadd.s32 %s230, 1
      %p234 = scmp.eq.s32.totalorder %s18, 1
      %p235 = scmp.ne.s32.totalorder %s230, %s232
      %p236 = scmp.eq.s32.totalorder %s18, 0
      %p237 = por %p235, %p236
      %p238 = scmp.ne.s32.totalorder %s230, %s232
      %p239 = scmp.eq.s32.totalorder %s23, 1
      %p240 = por %p238, %p239
      %p241 = scmp.ne.s32.totalorder %s232, %s233
      %p242 = scmp.eq.s32.totalorder %s23, 0
      %p243 = por %p241, %p242
      %p244 = scmp.ne.s32.totalorder %s232, %s233
      %p245 = scmp.eq.s32.totalorder %s24, 1
      %p246 = por %p244, %p245
      %p248 = scmp.ne.s32.totalorder %s233, %s247
      %p249 = scmp.eq.s32.totalorder %s24, 0
      %p250 = por %p248, %p249
      %s251 = ssub.s32 %s25, %s37
      %s252 = ssub.s32 %s26, %s33
      %s253 = sor.u32 %s251, %s252
      %p254 = scmp.eq.s32.totalorder %s253, 0
      %s256 = sadd.s32 %s255, 1
      %s257 = scalar_select %p254, %s255, %s256
      %p260 = pneg %p254
      %p261 = scmp.eq.s32.totalorder %s18, 1
      %p262 = por %p260, %p261
      %p263 = scmp.ne.s32.totalorder %s255, %s258
      %p264 = scmp.eq.s32.totalorder %s18, 0
      %p265 = por %p263, %p264
      %p266 = scmp.ne.s32.totalorder %s255, %s258
      %p267 = scmp.eq.s32.totalorder %s23, 1
      %p268 = por %p266, %p267
      %p269 = scmp.ne.s32.totalorder %s258, %s259
      %p270 = scmp.eq.s32.totalorder %s23, 0
      %p271 = por %p269, %p270
      %p272 = scmp.ne.s32.totalorder %s258, %s259
      %p273 = scmp.eq.s32.totalorder %s24, 1
      %p274 = por %p272, %p273
      %p276 = scmp.ne.s32.totalorder %s259, %s275
      %p277 = scmp.eq.s32.totalorder %s24, 0
      %p278 = por %p276, %p277
      %p279 = scmp.le.s32.totalorder 1, %s18
      %p280 = scmp.lt.s32.totalorder %s18, 3
      %p281 = pnand %p279, %p280
      %p282 = pneg %p281
      // Predicated region
      $region9: #{pointnet_fp_forward.1} parent=5 // pred_check
        _
      $region10: #{pointnet_fp_forward.1} parent=5 // pred_check_branch
        %284 = sbr.rel (%p281) target = $region12
      $region11: #{pointnet_fp_forward.1} parent=5 // pred_region
        %s285 = ssub.s32 %s18, 1
        // Predicated region
        $region13: #{pointnet_fp_forward.1} parent=11 // pred_check
          %p286 = pneg %p159
        $region14: #{pointnet_fp_forward.1} parent=11 // pred_check_branch
          %288 = sbr.rel (%p286) target = $region16
        $region15: #{pointnet_fp_forward.1} parent=11 // pred_region
          _
        $region16: #{pointnet_fp_forward.1} parent=11 // pred_fallthru
          _
        // Predicated region
        $region17: #{pointnet_fp_forward.1} parent=11 // pred_check
          %p289 = pneg %p180
        $region18: #{pointnet_fp_forward.1} parent=11 // pred_check_branch
          %291 = sbr.rel (%p289) target = $region20
        $region19: #{pointnet_fp_forward.1} parent=11 // pred_region
          _
        $region20: #{pointnet_fp_forward.1} parent=11 // pred_fallthru
          _
        // Predicated region
        $region21: #{pointnet_fp_forward.1} parent=11 // pred_check
          %p292 = pneg %p201
        $region22: #{pointnet_fp_forward.1} parent=11 // pred_check_branch
          %294 = sbr.rel (%p292) target = $region24
        $region23: #{pointnet_fp_forward.1} parent=11 // pred_region
          _
        $region24: #{pointnet_fp_forward.1} parent=11 // pred_fallthru
          _
        // Predicated region
        $region25: #{pointnet_fp_forward.1} parent=11 // pred_check
          %p295 = pneg %p222
        $region26: #{pointnet_fp_forward.1} parent=11 // pred_check_branch
          %297 = sbr.rel (%p295) target = $region28
        $region27: #{pointnet_fp_forward.1} parent=11 // pred_region
          _
        $region28: #{pointnet_fp_forward.1} parent=11 // pred_fallthru
          _
        // Predicated region
        $region29: #{pointnet_fp_forward.1} parent=11 // pred_check
          %p298 = pneg %p243
        $region30: #{pointnet_fp_forward.1} parent=11 // pred_check_branch
          %300 = sbr.rel (%p298) target = $region32
        $region31: #{pointnet_fp_forward.1} parent=11 // pred_region
          _
        $region32: #{pointnet_fp_forward.1} parent=11 // pred_fallthru
          _
      $region12: #{pointnet_fp_forward.1} parent=5 // pred_fallthru
        _
      %p301 = scmp.lt.s32.totalorder %s18, 2
      // Predicated region
      $region33: #{pointnet_fp_forward.1} parent=5 // pred_check
        %p302 = pneg %p301
      $region34: #{pointnet_fp_forward.1} parent=5 // pred_check_branch
        %304 = sbr.rel (%p302) target = $region36
      $region35: #{pointnet_fp_forward.1} parent=5 // pred_region
        // Predicated region
        $region37: #{pointnet_fp_forward.1} parent=35 // pred_check
          %p305 = pneg %p52
        $region38: #{pointnet_fp_forward.1} parent=35 // pred_check_branch
          %307 = sbr.rel (%p305) target = $region40
        $region39: #{pointnet_fp_forward.1} parent=35 // pred_region
          %p308 = scmp.lt.s32.totalorder %s25, 1
          %s309 = scalar_select %p308, %s25, 1
          %p310 = scmp.lt.s32.totalorder %s26, 0
          %s311 = scalar_select %p310, %s26, 0
          %s312 = sadd.s32 %s311, %s309
          %s313 = smul.addr %s312, 4
          %s314 = scalar_lea.vmem %s0, %s313
        $region40: #{pointnet_fp_forward.1} parent=35 // pred_fallthru
          _
        // Predicated region
        $region41: #{pointnet_fp_forward.1} parent=35 // pred_check
          %p315 = pneg %p78
        $region42: #{pointnet_fp_forward.1} parent=35 // pred_check_branch
          %317 = sbr.rel (%p315) target = $region44
        $region43: #{pointnet_fp_forward.1} parent=35 // pred_region
          %p318 = scmp.lt.s32.totalorder %s25, 1
          %s319 = scalar_select %p318, %s25, 1
          %s320 = smul.addr %s319, 8
          %s321 = scalar_lea.vmem %s1, %s320
        $region44: #{pointnet_fp_forward.1} parent=35 // pred_fallthru
          _
        // Predicated region
        $region45: #{pointnet_fp_forward.1} parent=35 // pred_check
          %p322 = pneg %p106
        $region46: #{pointnet_fp_forward.1} parent=35 // pred_check_branch
          %324 = sbr.rel (%p322) target = $region48
        $region47: #{pointnet_fp_forward.1} parent=35 // pred_region
          %p325 = scmp.lt.s32.totalorder %s25, 1
          %s326 = scalar_select %p325, %s25, 1
          %p327 = scmp.lt.s32.totalorder %s26, 0
          %s328 = scalar_select %p327, %s26, 0
          %s329 = sadd.s32 %s328, %s326
          %s330 = smul.addr %s329, 2
          %s331 = scalar_lea.vmem %s2, %s330
        $region48: #{pointnet_fp_forward.1} parent=35 // pred_fallthru
          _
        // Predicated region
        $region49: #{pointnet_fp_forward.1} parent=35 // pred_check
          %p332 = pneg %p132
        $region50: #{pointnet_fp_forward.1} parent=35 // pred_check_branch
          %334 = sbr.rel (%p332) target = $region52
        $region51: #{pointnet_fp_forward.1} parent=35 // pred_region
          %p335 = scmp.lt.s32.totalorder %s25, 1
          %s336 = scalar_select %p335, %s25, 1
          %s337 = smul.addr %s336, 2
          %s338 = smul.addr %s337, 4
          %s339 = scalar_lea.vmem %s3, %s338
        $region52: #{pointnet_fp_forward.1} parent=35 // pred_fallthru
          _
      $region36: #{pointnet_fp_forward.1} parent=5 // pred_fallthru
        _
      %p340 = scmp.le.s32.totalorder 1, %s18
      %p341 = scmp.lt.s32.totalorder %s18, 3
      %p342 = pnand %p340, %p341
      %p343 = pneg %p342
      // Predicated region
      $region53: #{pointnet_fp_forward.1} parent=5 // pred_check
        _
      $region54: #{pointnet_fp_forward.1} parent=5 // pred_check_branch
        %345 = sbr.rel (%p342) target = $region56
      $region55: #{pointnet_fp_forward.1} parent=5 // pred_region
        %s346 = ssub.s32 %s18, 1
        %p347 = scmp.lt.s32.totalorder %s27, 1
        %s348 = scalar_select %p347, %s27, 1
        %p349 = scmp.lt.s32.totalorder %s28, 0
        %s350 = scalar_select %p349, %s28, 0
        %s351 = sadd.s32 %s350, %s348
        %s352 = smul.addr %s351, 4
        %s353 = scalar_lea.vmem %s0, %s352
        %p354 = pneg %p58
        %p355 = pneg %p55
        %p356 = scmp.lt.s32.totalorder %s27, 1
        %s357 = scalar_select %p356, %s27, 1
        %s358 = smul.addr %s357, 8
        %s359 = scalar_lea.vmem %s1, %s358
        %p360 = pneg %p84
        %p361 = pneg %p81
        %p362 = scmp.lt.s32.totalorder %s27, 1
        %s363 = scalar_select %p362, %s27, 1
        %p364 = scmp.lt.s32.totalorder %s28, 0
        %s365 = scalar_select %p364, %s28, 0
        %s366 = sadd.s32 %s365, %s363
        %s367 = smul.addr %s366, 2
        %s368 = scalar_lea.vmem %s2, %s367
        %p369 = pneg %p112
        %p370 = pneg %p109
        %p371 = scmp.lt.s32.totalorder %s27, 1
        %s372 = scalar_select %p371, %s27, 1
        %s373 = smul.addr %s372, 2
        %s374 = smul.addr %s373, 4
        %s375 = scalar_lea.vmem %s3, %s374
        %p376 = pneg %p138
        %p377 = pneg %p135
        %p378 = pneg %p159
        %p379 = pneg %p156
        %p380 = pneg %p180
        %p381 = pneg %p177
        %p382 = pneg %p201
        %p383 = pneg %p198
        %p384 = pneg %p222
        %p385 = pneg %p219
        %p386 = pneg %p243
        %p387 = pneg %p240
        %p388 = pneg %p271
        %p389 = pneg %p268
        %s390 = sand.u32 %s258, 1
        %s391 = scalar_lea.sflag [#allocation3], %s390
        %s392 = sand.u32 %s258, 1
        %s393 = smul.addr %s392, 16
        %s394 = scalar_lea.vmem [#allocation2], %s393
        %p395 = scmp.lt.s32.totalorder %s27, 1
        %s396 = scalar_select %p395, %s27, 1
        %p397 = scmp.lt.s32.totalorder %s28, 0
        %s398 = scalar_select %p397, %s28, 0
        %s399 = sadd.s32 %s398, %s396
        %s400 = smul.addr %s399, 4
        %s401 = scalar_lea.vmem %s0, %s400
        %p402 = scmp.lt.s32.totalorder %s27, 1
        %s403 = scalar_select %p402, %s27, 1
        %s404 = smul.addr %s403, 8
        %s405 = scalar_lea.vmem %s1, %s404
        %p406 = scmp.lt.s32.totalorder %s27, 1
        %s407 = scalar_select %p406, %s27, 1
        %p408 = scmp.lt.s32.totalorder %s28, 0
        %s409 = scalar_select %p408, %s28, 0
        %s410 = sadd.s32 %s409, %s407
        %s411 = smul.addr %s410, 2
        %s412 = scalar_lea.vmem %s2, %s411
        %p413 = scmp.lt.s32.totalorder %s27, 1
        %s414 = scalar_select %p413, %s27, 1
        %s415 = smul.addr %s414, 2
        %s416 = smul.addr %s415, 4
        %s417 = scalar_lea.vmem %s3, %s416
        %v419 = vlaneseq
        %v420 = vshrl.u32 %v419, 7
        %v421 = vadd.s32 %v420, 8
        %v422 = vadd.s32 %v420, 16
        %v423 = vadd.s32 %v420, 24
        %v424 = vadd.s32 %v420, 32
        %v425 = vadd.s32 %v420, 40
        %v426 = vadd.s32 %v420, 48
        %v427 = vadd.s32 %v420, 56
        %v428 = vld [vmem:[%s4] sm:$0xf]
        %v429 = vld [vmem:[%s4 + $0x4] sm:$0xf]
        %v430 = vld [vmem:[%s4 + $0x8] sm:$0xf]
        %v431 = vld [vmem:[%s4 + $0xc] sm:$0xf]
        %v432 = vld [vmem:[%s5] sm:$0xf]
        %v433 = vld [vmem:[%s5 + $0x4] sm:$0xf]
        %v434 = vld [vmem:[%s5 + $0x8] sm:$0xf]
        %v435 = vld [vmem:[%s5 + $0xc] sm:$0xf]
        %v436 = vld [vmem:[%s6] sm:$0xff]
        %v437 = vld [vmem:[%s6 + $0x8] sm:$0xff]
        %v438 = vld [vmem:[%s6 + $0x10] sm:$0xff]
        %v439 = vld [vmem:[%s6 + $0x18] sm:$0xff]
        %v440 = vld [vmem:[%s7] sm:$0xf]
        %v441 = vld [vmem:[%s7 + $0x4] sm:$0xf]
        %v442 = vld [vmem:[%s8] sm:$0xff]
        %v443 = vld [vmem:[%s8 + $0x8] sm:$0xff]
        %v444 = vld [vmem:[%s401] sm:$0x7]
        %v445 = vld [vmem:[%s405] sm:$0xff]
        %446 = vxpose.xlu0.b32.start [1/16] %v445, 128
        %447 = vxpose.xlu0.b32.cont [2/16] 0.0, 128
        %448 = vxpose.xlu0.b32.cont [3/16] 0.0, 128
        %449 = vxpose.xlu0.b32.cont [4/16] 0.0, 128
        %450 = vxpose.xlu0.b32.cont [5/16] 0.0, 128
        %451 = vxpose.xlu0.b32.cont [6/16] 0.0, 128
        %452 = vxpose.xlu0.b32.cont [7/16] 0.0, 128
        %453 = vxpose.xlu0.b32.cont [8/16] 0.0, 128
        %454 = vxpose.xlu0.b32.cont [9/16] 0.0, 128
        %455 = vxpose.xlu0.b32.cont [10/16] 0.0, 128
        %456 = vxpose.xlu0.b32.cont [11/16] 0.0, 128
        %457 = vxpose.xlu0.b32.cont [12/16] 0.0, 128
        %458 = vxpose.xlu0.b32.cont [13/16] 0.0, 128
        %459 = vxpose.xlu0.b32.cont [14/16] 0.0, 128
        %460 = vxpose.xlu0.b32.cont [15/16] 0.0, 128
        %461 = vxpose.xlu0.b32.end [16/16] 0.0, 128
        %v462 = vpop.trf.xlu0
        %v463 = vpop.trf.xlu0
        %v464 = vpop.trf.xlu0
        %v465 = vpop.trf.xlu0
        %v466 = vpop.trf.xlu0
        %v467 = vpop.trf.xlu0
        %v468 = vpop.trf.xlu0
        %v469 = vpop.trf.xlu0
        %v470 = vpop.trf.xlu0
        %v471 = vpop.trf.xlu0
        %v472 = vpop.trf.xlu0
        %v473 = vpop.trf.xlu0
        %v474 = vpop.trf.xlu0
        %v475 = vpop.trf.xlu0
        %v476 = vpop.trf.xlu0
        %v477 = vpop.trf.xlu0
        %v478 = vld [vmem:[%s417] sm:$0xf]
        %v479 = vld [vmem:[%s417 + $0x4] sm:$0x3]
        %481 = vset.pattern.permute.xlu0 0
        %482 = vperm.xlu0 %481, %v462
        %v483 = vpop.permute.xlu0 %482
        %486 = vset.pattern.permute.xlu0 0
        %487 = vperm.xlu0 %486, %v463
        %v488 = vpop.permute.xlu0 %487
        %491 = vset.pattern.permute.xlu0 0
        %492 = vperm.xlu0 %491, %v464
        %v493 = vpop.permute.xlu0 %492
        %496 = vset.pattern.permute.xlu0 0
        %497 = vperm.xlu0 %496, %v465
        %v498 = vpop.permute.xlu0 %497
        %501 = vset.pattern.permute.xlu0 0
        %502 = vperm.xlu0 %501, %v466
        %v503 = vpop.permute.xlu0 %502
        %506 = vset.pattern.permute.xlu0 0
        %507 = vperm.xlu0 %506, %v467
        %v508 = vpop.permute.xlu0 %507
        %511 = vset.pattern.permute.xlu0 0
        %512 = vperm.xlu0 %511, %v468
        %v513 = vpop.permute.xlu0 %512
        %516 = vset.pattern.permute.xlu0 0
        %517 = vperm.xlu0 %516, %v469
        %v518 = vpop.permute.xlu0 %517
        %v520 = vlaneseq
        %v521 = vshrl.u32 %v520, 7
        %v522 = vsub.s32 0, %v521
        %v523 = vrot.slane %v444, %v522
        %v524 = vsub.f32 %v483, %v523
        %v525 = vsub.f32 %v488, %v523
        %v526 = vsub.f32 %v493, %v523
        %v527 = vsub.f32 %v498, %v523
        %v528 = vsub.f32 %v503, %v523
        %v529 = vsub.f32 %v508, %v523
        %v530 = vsub.f32 %v513, %v523
        %v531 = vsub.f32 %v518, %v523
        %v532 = vmul.f32 %v524, %v524
        %v533 = vmul.f32 %v525, %v525
        %v534 = vmul.f32 %v526, %v526
        %v535 = vmul.f32 %v527, %v527
        %v536 = vmul.f32 %v528, %v528
        %v537 = vmul.f32 %v529, %v529
        %v538 = vmul.f32 %v530, %v530
        %v539 = vmul.f32 %v531, %v531
        %540 = vset.pattern.permute.xlu0 1
        %541 = vperm.xlu0 %540, %v462
        %v542 = vpop.permute.xlu0 %541
        %544 = vset.pattern.permute.xlu0 1
        %545 = vperm.xlu0 %544, %v463
        %v546 = vpop.permute.xlu0 %545
        %548 = vset.pattern.permute.xlu0 1
        %549 = vperm.xlu0 %548, %v464
        %v550 = vpop.permute.xlu0 %549
        %552 = vset.pattern.permute.xlu0 1
        %553 = vperm.xlu0 %552, %v465
        %v554 = vpop.permute.xlu0 %553
        %556 = vset.pattern.permute.xlu0 1
        %557 = vperm.xlu0 %556, %v466
        %v558 = vpop.permute.xlu0 %557
        %560 = vset.pattern.permute.xlu0 1
        %561 = vperm.xlu0 %560, %v467
        %v562 = vpop.permute.xlu0 %561
        %564 = vset.pattern.permute.xlu0 1
        %565 = vperm.xlu0 %564, %v468
        %v566 = vpop.permute.xlu0 %565
        %568 = vset.pattern.permute.xlu0 1
        %569 = vperm.xlu0 %568, %v469
        %v570 = vpop.permute.xlu0 %569
        %v572 = vlaneseq
        %v573 = vshrl.u32 %v572, 7
        %v574 = vsub.s32 1, %v573
        %v575 = vrot.slane %v444, %v574
        %v576 = vsub.f32 %v542, %v575
        %v577 = vsub.f32 %v546, %v575
        %v578 = vsub.f32 %v550, %v575
        %v579 = vsub.f32 %v554, %v575
        %v580 = vsub.f32 %v558, %v575
        %v581 = vsub.f32 %v562, %v575
        %v582 = vsub.f32 %v566, %v575
        %v583 = vsub.f32 %v570, %v575
        %v584 = vmul.f32 %v576, %v576
        %v585 = vmul.f32 %v577, %v577
        %v586 = vmul.f32 %v578, %v578
        %v587 = vmul.f32 %v579, %v579
        %v588 = vmul.f32 %v580, %v580
        %v589 = vmul.f32 %v581, %v581
        %v590 = vmul.f32 %v582, %v582
        %v591 = vmul.f32 %v583, %v583
        %v592 = vadd.f32 %v532, %v584
        %v593 = vadd.f32 %v533, %v585
        %v594 = vadd.f32 %v534, %v586
        %v595 = vadd.f32 %v535, %v587
        %v596 = vadd.f32 %v536, %v588
        %v597 = vadd.f32 %v537, %v589
        %v598 = vadd.f32 %v538, %v590
        %v599 = vadd.f32 %v539, %v591
        %600 = vset.pattern.permute.xlu0 2
        %601 = vperm.xlu0 %600, %v462
        %v602 = vpop.permute.xlu0 %601
        %604 = vset.pattern.permute.xlu0 2
        %605 = vperm.xlu0 %604, %v463
        %v606 = vpop.permute.xlu0 %605
        %608 = vset.pattern.permute.xlu0 2
        %609 = vperm.xlu0 %608, %v464
        %v610 = vpop.permute.xlu0 %609
        %612 = vset.pattern.permute.xlu0 2
        %613 = vperm.xlu0 %612, %v465
        %v614 = vpop.permute.xlu0 %613
        %616 = vset.pattern.permute.xlu0 2
        %617 = vperm.xlu0 %616, %v466
        %v618 = vpop.permute.xlu0 %617
        %620 = vset.pattern.permute.xlu0 2
        %621 = vperm.xlu0 %620, %v467
        %v622 = vpop.permute.xlu0 %621
        %624 = vset.pattern.permute.xlu0 2
        %625 = vperm.xlu0 %624, %v468
        %v626 = vpop.permute.xlu0 %625
        %628 = vset.pattern.permute.xlu0 2
        %629 = vperm.xlu0 %628, %v469
        %v630 = vpop.permute.xlu0 %629
        %v632 = vlaneseq
        %v633 = vshrl.u32 %v632, 7
        %v634 = vsub.s32 2, %v633
        %v635 = vrot.slane %v444, %v634
        %v636 = vsub.f32 %v602, %v635
        %v637 = vsub.f32 %v606, %v635
        %v638 = vsub.f32 %v610, %v635
        %v639 = vsub.f32 %v614, %v635
        %v640 = vsub.f32 %v618, %v635
        %v641 = vsub.f32 %v622, %v635
        %v642 = vsub.f32 %v626, %v635
        %v643 = vsub.f32 %v630, %v635
        %v644 = vmul.f32 %v636, %v636
        %v645 = vmul.f32 %v637, %v637
        %v646 = vmul.f32 %v638, %v638
        %v647 = vmul.f32 %v639, %v639
        %v648 = vmul.f32 %v640, %v640
        %v649 = vmul.f32 %v641, %v641
        %v650 = vmul.f32 %v642, %v642
        %v651 = vmul.f32 %v643, %v643
        %v652 = vadd.f32 %v592, %v644
        %v653 = vadd.f32 %v593, %v645
        %v654 = vadd.f32 %v594, %v646
        %v655 = vadd.f32 %v595, %v647
        %v656 = vadd.f32 %v596, %v648
        %v657 = vadd.f32 %v597, %v649
        %v658 = vadd.f32 %v598, %v650
        %v659 = vadd.f32 %v599, %v651
        %v660 = vmin.f32 %v652, %v656
        %v661 = vmin.f32 %v653, %v657
        %v662 = vmin.f32 %v654, %v658
        %v663 = vmin.f32 %v655, %v659
        %v664 = vmin.f32 %v660, %v661
        %v665 = vmin.f32 %v662, %v663
        %v666 = vmin.f32 %v664, %v665
        %v667 = vrot.slane %v666, 4
        %v668 = vmin.f32 %v666, %v667
        %v669 = vrot.slane %v668, 2
        %v670 = vmin.f32 %v668, %v669
        %v671 = vrot.slane %v670, 1
        %v672 = vmin.f32 %v670, %v671
        %vm673 = vcmp.le.f32.partialorder %v652, %v672
        %vm674 = vcmp.le.f32.partialorder %v653, %v672
        %vm675 = vcmp.le.f32.partialorder %v654, %v672
        %vm676 = vcmp.le.f32.partialorder %v655, %v672
        %vm677 = vcmp.le.f32.partialorder %v656, %v672
        %vm678 = vcmp.le.f32.partialorder %v657, %v672
        %vm679 = vcmp.le.f32.partialorder %v658, %v672
        %vm680 = vcmp.le.f32.partialorder %v659, %v672
        %v681 = vsel %vm673, %v420, 64
        %v682 = vsel %vm674, %v421, 64
        %v683 = vsel %vm675, %v422, 64
        %v684 = vsel %vm676, %v423, 64
        %v685 = vsel %vm677, %v424, 64
        %v686 = vsel %vm678, %v425, 64
        %v687 = vsel %vm679, %v426, 64
        %v688 = vsel %vm680, %v427, 64
        %vm689 = vcmp.lt.s32.totalorder %v681, %v685
        %v690 = vsel %vm689, %v681, %v685
        %vm691 = vcmp.lt.s32.totalorder %v682, %v686
        %v692 = vsel %vm691, %v682, %v686
        %vm693 = vcmp.lt.s32.totalorder %v683, %v687
        %v694 = vsel %vm693, %v683, %v687
        %vm695 = vcmp.lt.s32.totalorder %v684, %v688
        %v696 = vsel %vm695, %v684, %v688
        %vm697 = vcmp.lt.s32.totalorder %v690, %v692
        %v698 = vsel %vm697, %v690, %v692
        %vm699 = vcmp.lt.s32.totalorder %v694, %v696
        %v700 = vsel %vm699, %v694, %v696
        %vm701 = vcmp.lt.s32.totalorder %v698, %v700
        %v702 = vsel %vm701, %v698, %v700
        %v703 = vrot.slane %v702, 4
        %vm704 = vcmp.lt.s32.totalorder %v702, %v703
        %v705 = vsel %vm704, %v702, %v703
        %v706 = vrot.slane %v705, 2
        %vm707 = vcmp.lt.s32.totalorder %v705, %v706
        %v708 = vsel %vm707, %v705, %v706
        %v709 = vrot.slane %v708, 1
        %vm710 = vcmp.lt.s32.totalorder %v708, %v709
        %v711 = vsel %vm710, %v708, %v709
        %vm712 = vcmp.eq.s32.totalorder %v420, %v711
        %vm713 = vcmp.eq.s32.totalorder %v421, %v711
        %vm714 = vcmp.eq.s32.totalorder %v422, %v711
        %vm715 = vcmp.eq.s32.totalorder %v423, %v711
        %vm716 = vcmp.eq.s32.totalorder %v424, %v711
        %vm717 = vcmp.eq.s32.totalorder %v425, %v711
        %vm718 = vcmp.eq.s32.totalorder %v426, %v711
        %vm719 = vcmp.eq.s32.totalorder %v427, %v711
        %v720 = vmax.f32 %v672, 0.0
        %v721 = vrsqrt.pop %v720
        %v722 = vmul.f32 %v720, %v721
        %vm723 = vcmp.eq.f32.partialorder %v720, inf
        %v724 = vsel %vm723, %v720, %v722
        %vm725 = vcmp.eq.f32.partialorder %v720, 0.0
        %v726 = vand.u32 %v720, 2147483648
        %v727 = vsel %vm725, %v726, %v724
        %v728 = vadd.f32 %v727, 1e-08
        %v729 = vrcp.pop %v728
        %v730 = vsel %vm712, %v729, 0.0
        %v731 = vsel %vm713, %v729, 0.0
        %v732 = vsel %vm714, %v729, 0.0
        %v733 = vsel %vm715, %v729, 0.0
        %v734 = vsel %vm716, %v729, 0.0
        %v735 = vsel %vm717, %v729, 0.0
        %v736 = vsel %vm718, %v729, 0.0
        %v737 = vsel %vm719, %v729, 0.0
        %v738 = vsel %vm712, 1e+30, %v652
        %v739 = vsel %vm713, 1e+30, %v653
        %v740 = vsel %vm714, 1e+30, %v654
        %v741 = vsel %vm715, 1e+30, %v655
        %v742 = vsel %vm716, 1e+30, %v656
        %v743 = vsel %vm717, 1e+30, %v657
        %v744 = vsel %vm718, 1e+30, %v658
        %v745 = vsel %vm719, 1e+30, %v659
        %v746 = vmin.f32 %v738, %v742
        %v747 = vmin.f32 %v739, %v743
        %v748 = vmin.f32 %v740, %v744
        %v749 = vmin.f32 %v741, %v745
        %v750 = vmin.f32 %v746, %v747
        %v751 = vmin.f32 %v748, %v749
        %v752 = vmin.f32 %v750, %v751
        %v753 = vrot.slane %v752, 4
        %v754 = vmin.f32 %v752, %v753
        %v755 = vrot.slane %v754, 2
        %v756 = vmin.f32 %v754, %v755
        %v757 = vrot.slane %v756, 1
        %v758 = vmin.f32 %v756, %v757
        %vm759 = vcmp.le.f32.partialorder %v738, %v758
        %vm760 = vcmp.le.f32.partialorder %v739, %v758
        %vm761 = vcmp.le.f32.partialorder %v740, %v758
        %vm762 = vcmp.le.f32.partialorder %v741, %v758
        %vm763 = vcmp.le.f32.partialorder %v742, %v758
        %vm764 = vcmp.le.f32.partialorder %v743, %v758
        %vm765 = vcmp.le.f32.partialorder %v744, %v758
        %vm766 = vcmp.le.f32.partialorder %v745, %v758
        %v767 = vsel %vm759, %v420, 64
        %v768 = vsel %vm760, %v421, 64
        %v769 = vsel %vm761, %v422, 64
        %v770 = vsel %vm762, %v423, 64
        %v771 = vsel %vm763, %v424, 64
        %v772 = vsel %vm764, %v425, 64
        %v773 = vsel %vm765, %v426, 64
        %v774 = vsel %vm766, %v427, 64
        %vm775 = vcmp.lt.s32.totalorder %v767, %v771
        %v776 = vsel %vm775, %v767, %v771
        %vm777 = vcmp.lt.s32.totalorder %v768, %v772
        %v778 = vsel %vm777, %v768, %v772
        %vm779 = vcmp.lt.s32.totalorder %v769, %v773
        %v780 = vsel %vm779, %v769, %v773
        %vm781 = vcmp.lt.s32.totalorder %v770, %v774
        %v782 = vsel %vm781, %v770, %v774
        %vm783 = vcmp.lt.s32.totalorder %v776, %v778
        %v784 = vsel %vm783, %v776, %v778
        %vm785 = vcmp.lt.s32.totalorder %v780, %v782
        %v786 = vsel %vm785, %v780, %v782
        %vm787 = vcmp.lt.s32.totalorder %v784, %v786
        %v788 = vsel %vm787, %v784, %v786
        %v789 = vrot.slane %v788, 4
        %vm790 = vcmp.lt.s32.totalorder %v788, %v789
        %v791 = vsel %vm790, %v788, %v789
        %v792 = vrot.slane %v791, 2
        %vm793 = vcmp.lt.s32.totalorder %v791, %v792
        %v794 = vsel %vm793, %v791, %v792
        %v795 = vrot.slane %v794, 1
        %vm796 = vcmp.lt.s32.totalorder %v794, %v795
        %v797 = vsel %vm796, %v794, %v795
        %vm798 = vcmp.eq.s32.totalorder %v420, %v797
        %vm799 = vcmp.eq.s32.totalorder %v421, %v797
        %vm800 = vcmp.eq.s32.totalorder %v422, %v797
        %vm801 = vcmp.eq.s32.totalorder %v423, %v797
        %vm802 = vcmp.eq.s32.totalorder %v424, %v797
        %vm803 = vcmp.eq.s32.totalorder %v425, %v797
        %vm804 = vcmp.eq.s32.totalorder %v426, %v797
        %vm805 = vcmp.eq.s32.totalorder %v427, %v797
        %v806 = vmax.f32 %v758, 0.0
        %v807 = vrsqrt.pop %v806
        %v808 = vmul.f32 %v806, %v807
        %vm809 = vcmp.eq.f32.partialorder %v806, inf
        %v810 = vsel %vm809, %v806, %v808
        %vm811 = vcmp.eq.f32.partialorder %v806, 0.0
        %v812 = vand.u32 %v806, 2147483648
        %v813 = vsel %vm811, %v812, %v810
        %v814 = vadd.f32 %v813, 1e-08
        %v815 = vrcp.pop %v814
        %v816 = vsel %vm798, %v815, 0.0
        %v817 = vsel %vm799, %v815, 0.0
        %v818 = vsel %vm800, %v815, 0.0
        %v819 = vsel %vm801, %v815, 0.0
        %v820 = vsel %vm802, %v815, 0.0
        %v821 = vsel %vm803, %v815, 0.0
        %v822 = vsel %vm804, %v815, 0.0
        %v823 = vsel %vm805, %v815, 0.0
        %v824 = vadd.f32 %v730, %v816
        %v825 = vadd.f32 %v731, %v817
        %v826 = vadd.f32 %v732, %v818
        %v827 = vadd.f32 %v733, %v819
        %v828 = vadd.f32 %v734, %v820
        %v829 = vadd.f32 %v735, %v821
        %v830 = vadd.f32 %v736, %v822
        %v831 = vadd.f32 %v737, %v823
        %v832 = vadd.f32 %v729, %v815
        %v833 = vsel %vm798, 1e+30, %v738
        %v834 = vsel %vm799, 1e+30, %v739
        %v835 = vsel %vm800, 1e+30, %v740
        %v836 = vsel %vm801, 1e+30, %v741
        %v837 = vsel %vm802, 1e+30, %v742
        %v838 = vsel %vm803, 1e+30, %v743
        %v839 = vsel %vm804, 1e+30, %v744
        %v840 = vsel %vm805, 1e+30, %v745
        %v841 = vmin.f32 %v833, %v837
        %v842 = vmin.f32 %v834, %v838
        %v843 = vmin.f32 %v835, %v839
        %v844 = vmin.f32 %v836, %v840
        %v845 = vmin.f32 %v841, %v842
        %v846 = vmin.f32 %v843, %v844
        %v847 = vmin.f32 %v845, %v846
        %v848 = vrot.slane %v847, 4
        %v849 = vmin.f32 %v847, %v848
        %v850 = vrot.slane %v849, 2
        %v851 = vmin.f32 %v849, %v850
        %v852 = vrot.slane %v851, 1
        %v853 = vmin.f32 %v851, %v852
        %vm854 = vcmp.le.f32.partialorder %v833, %v853
        %vm855 = vcmp.le.f32.partialorder %v834, %v853
        %vm856 = vcmp.le.f32.partialorder %v835, %v853
        %vm857 = vcmp.le.f32.partialorder %v836, %v853
        %vm858 = vcmp.le.f32.partialorder %v837, %v853
        %vm859 = vcmp.le.f32.partialorder %v838, %v853
        %vm860 = vcmp.le.f32.partialorder %v839, %v853
        %vm861 = vcmp.le.f32.partialorder %v840, %v853
        %v862 = vsel %vm854, %v420, 64
        %v863 = vsel %vm855, %v421, 64
        %v864 = vsel %vm856, %v422, 64
        %v865 = vsel %vm857, %v423, 64
        %v866 = vsel %vm858, %v424, 64
        %v867 = vsel %vm859, %v425, 64
        %v868 = vsel %vm860, %v426, 64
        %v869 = vsel %vm861, %v427, 64
        %vm870 = vcmp.lt.s32.totalorder %v862, %v866
        %v871 = vsel %vm870, %v862, %v866
        %vm872 = vcmp.lt.s32.totalorder %v863, %v867
        %v873 = vsel %vm872, %v863, %v867
        %vm874 = vcmp.lt.s32.totalorder %v864, %v868
        %v875 = vsel %vm874, %v864, %v868
        %vm876 = vcmp.lt.s32.totalorder %v865, %v869
        %v877 = vsel %vm876, %v865, %v869
        %vm878 = vcmp.lt.s32.totalorder %v871, %v873
        %v879 = vsel %vm878, %v871, %v873
        %vm880 = vcmp.lt.s32.totalorder %v875, %v877
        %v881 = vsel %vm880, %v875, %v877
        %vm882 = vcmp.lt.s32.totalorder %v879, %v881
        %v883 = vsel %vm882, %v879, %v881
        %v884 = vrot.slane %v883, 4
        %vm885 = vcmp.lt.s32.totalorder %v883, %v884
        %v886 = vsel %vm885, %v883, %v884
        %v887 = vrot.slane %v886, 2
        %vm888 = vcmp.lt.s32.totalorder %v886, %v887
        %v889 = vsel %vm888, %v886, %v887
        %v890 = vrot.slane %v889, 1
        %vm891 = vcmp.lt.s32.totalorder %v889, %v890
        %v892 = vsel %vm891, %v889, %v890
        %vm893 = vcmp.eq.s32.totalorder %v420, %v892
        %vm894 = vcmp.eq.s32.totalorder %v421, %v892
        %vm895 = vcmp.eq.s32.totalorder %v422, %v892
        %vm896 = vcmp.eq.s32.totalorder %v423, %v892
        %vm897 = vcmp.eq.s32.totalorder %v424, %v892
        %vm898 = vcmp.eq.s32.totalorder %v425, %v892
        %vm899 = vcmp.eq.s32.totalorder %v426, %v892
        %vm900 = vcmp.eq.s32.totalorder %v427, %v892
        %v901 = vmax.f32 %v853, 0.0
        %v902 = vrsqrt.pop %v901
        %v903 = vmul.f32 %v901, %v902
        %vm904 = vcmp.eq.f32.partialorder %v901, inf
        %v905 = vsel %vm904, %v901, %v903
        %vm906 = vcmp.eq.f32.partialorder %v901, 0.0
        %v907 = vand.u32 %v901, 2147483648
        %v908 = vsel %vm906, %v907, %v905
        %v909 = vadd.f32 %v908, 1e-08
        %v910 = vrcp.pop %v909
        %v911 = vsel %vm893, %v910, 0.0
        %v912 = vsel %vm894, %v910, 0.0
        %v913 = vsel %vm895, %v910, 0.0
        %v914 = vsel %vm896, %v910, 0.0
        %v915 = vsel %vm897, %v910, 0.0
        %v916 = vsel %vm898, %v910, 0.0
        %v917 = vsel %vm899, %v910, 0.0
        %v918 = vsel %vm900, %v910, 0.0
        %v919 = vadd.f32 %v824, %v911
        %v920 = vadd.f32 %v825, %v912
        %v921 = vadd.f32 %v826, %v913
        %v922 = vadd.f32 %v827, %v914
        %v923 = vadd.f32 %v828, %v915
        %v924 = vadd.f32 %v829, %v916
        %v925 = vadd.f32 %v830, %v917
        %v926 = vadd.f32 %v831, %v918
        %v927 = vadd.f32 %v832, %v910
        %v928 = vpack.c.bf16 %v920, %v919
        %v929 = vpack.c.bf16 %v922, %v921
        %v930 = vpack.c.bf16 %v924, %v923
        %v931 = vpack.c.bf16 %v926, %v925
        %v934 = vunpack.c.l.b16 %v478
        %v935 = vunpack.c.l.b16 %v479
        %v936 = vpack.c.b16 %v935, %v934
        %vm937 = vcmask 523264
        %v939 = vsel %vm937, %v936, 0
        %941 = vmatprep.subr.bf16.mxu0 0
        %942 = vmatpush1.bf16.msra.mxu0 %v928
        %943 = vmatprep.subr.bf16.mxu0 0
        %944 = vmatpush1.bf16.msra.mxu0 %v929
        %945 = vmatprep.subr.bf16.mxu0 0
        %946 = vmatpush1.bf16.msra.mxu0 %v930
        %947 = vmatprep.subr.bf16.mxu0 0
        %948 = vmatpush1.bf16.msra.mxu0 %v931
        %949 = vmatprep.subr.bf16.mxu0 0
        %950 = vmatpush1.bf16.msra.mxu0 0
        %951 = vmatprep.subr.bf16.mxu0 0
        %952 = vmatpush1.bf16.msra.mxu0 0
        %953 = vmatprep.subr.bf16.mxu0 0
        %954 = vmatpush1.bf16.msra.mxu0 0
        %955 = vmatprep.subr.bf16.mxu0 0
        %956 = vmatpush1.bf16.msra.mxu0 0
        %957 = vmatprep.subr.bf16.mxu0 0
        %958 = vmatpush1.bf16.msra.mxu0 0
        %959 = vmatprep.subr.bf16.mxu0 0
        %960 = vmatpush1.bf16.msra.mxu0 0
        %961 = vmatprep.subr.bf16.mxu0 0
        %962 = vmatpush1.bf16.msra.mxu0 0
        %963 = vmatprep.subr.bf16.mxu0 0
        %964 = vmatpush1.bf16.msra.mxu0 0
        %965 = vmatprep.subr.bf16.mxu0 0
        %966 = vmatpush1.bf16.msra.mxu0 0
        %967 = vmatprep.subr.bf16.mxu0 0
        %968 = vmatpush1.bf16.msra.mxu0 0
        %969 = vmatprep.subr.bf16.mxu0 0
        %970 = vmatpush1.bf16.msra.mxu0 0
        %971 = vmatprep.subr.bf16.mxu0 0
        %972 = vmatpush1.bf16.msra.mxu0 0
        %973 = vmatprep.mubr.bf16.mxu0 0
        %974 = vmatmul.mubr.bf16.gmra.mrb[0].mxu0 %v939
        %v975 = vpop.f32.mrb[0].mxu0
        %v976 = vadd.f32 0.0, %v975
        %v977 = vpop.f32.mrb[0].mxu0
        %v978 = vpop.f32.mrb[0].mxu0
        %v979 = vadd.f32 0.0, %v978
        %v980 = vpop.f32.mrb[0].mxu0
        %981 = vdwg.mxu0
        %v982 = vrcp.pop %v927
        %v983 = vmul.f32 %v976, %v982
        %v984 = vmul.f32 %v979, %v982
        %v985 = vpack.c.bf16 %v984, %v983
        %v986 = vld [vmem:[%s412] sm:$0x3]
        %v991 = vunpack.c.l.b16 %v432
        %v992 = vunpack.c.l.b16 %v433
        %v993 = vunpack.c.l.b16 %v434
        %v994 = vunpack.c.l.b16 %v435
        %v995 = vpack.c.b16 %v992, %v991
        %v996 = vpack.c.b16 %v994, %v993
        %vm997 = vcmask 31744
        %v999 = vsel %vm997, %v995, 0
        %v1002 = vsel %vm997, %v996, 0
        %vm1004 = vcmask 1041408
        %v1006 = vsel %vm1004, %v986, 0
        %1008 = vmatprep.subr.bf16.mxu0 0
        %1009 = vmatpush1.bf16.msra.mxu0 %v1006
        %1010 = vmatprep.subr.bf16.mxu0 0
        %1011 = vmatpush1.bf16.msra.mxu0 0
        %1012 = vmatprep.subr.bf16.mxu0 0
        %1013 = vmatpush1.bf16.msra.mxu0 0
        %1014 = vmatprep.subr.bf16.mxu0 0
        %1015 = vmatpush1.bf16.msra.mxu0 0
        %1016 = vmatprep.subr.bf16.mxu0 0
        %1017 = vmatpush1.bf16.msra.mxu0 0
        %1018 = vmatprep.subr.bf16.mxu0 0
        %1019 = vmatpush1.bf16.msra.mxu0 0
        %1020 = vmatprep.subr.bf16.mxu0 0
        %1021 = vmatpush1.bf16.msra.mxu0 0
        %1022 = vmatprep.subr.bf16.mxu0 0
        %1023 = vmatpush1.bf16.msra.mxu0 0
        %1024 = vmatprep.subr.bf16.mxu0 0
        %1025 = vmatpush1.bf16.msra.mxu0 0
        %1026 = vmatprep.subr.bf16.mxu0 0
        %1027 = vmatpush1.bf16.msra.mxu0 0
        %1028 = vmatprep.subr.bf16.mxu0 0
        %1029 = vmatpush1.bf16.msra.mxu0 0
        %1030 = vmatprep.subr.bf16.mxu0 0
        %1031 = vmatpush1.bf16.msra.mxu0 0
        %1032 = vmatprep.subr.bf16.mxu0 0
        %1033 = vmatpush1.bf16.msra.mxu0 0
        %1034 = vmatprep.subr.bf16.mxu0 0
        %1035 = vmatpush1.bf16.msra.mxu0 0
        %1036 = vmatprep.subr.bf16.mxu0 0
        %1037 = vmatpush1.bf16.msra.mxu0 0
        %1038 = vmatprep.subr.bf16.mxu0 0
        %1039 = vmatpush1.bf16.msra.mxu0 0
        %1040 = vmatprep.mubr.bf16.mxu0 0
        %1041 = vmatmul.mubr.bf16.gmra.mrb[0].mxu0 %v999
        %v1042 = vpop.f32.mrb[0].mxu0
        %v1043 = vadd.f32 0.0, %v1042
        %v1044 = vpop.f32.mrb[0].mxu0
        %v1045 = vpop.f32.mrb[0].mxu0
        %v1046 = vadd.f32 0.0, %v1045
        %v1047 = vpop.f32.mrb[0].mxu0
        %1048 = vmatprep.mubr.bf16.mxu0 0
        %1049 = vmatmul.mubr.bf16.gmra.mrb[0].mxu0 %v1002
        %v1050 = vpop.f32.mrb[0].mxu0
        %v1051 = vadd.f32 0.0, %v1050
        %v1052 = vpop.f32.mrb[0].mxu0
        %v1053 = vpop.f32.mrb[0].mxu0
        %v1054 = vadd.f32 0.0, %v1053
        %v1055 = vpop.f32.mrb[0].mxu0
        %1056 = vdwg.mxu0
        %v1061 = vunpack.c.l.b16 %v428
        %v1062 = vunpack.c.l.b16 %v429
        %v1063 = vunpack.c.l.b16 %v430
        %v1064 = vunpack.c.l.b16 %v431
        %v1065 = vpack.c.b16 %v1062, %v1061
        %v1066 = vpack.c.b16 %v1064, %v1063
        %vm1067 = vcmask 97280
        %v1069 = vsel %vm1067, %v1065, 0
        %v1072 = vsel %vm1067, %v1066, 0
        %vm1074 = vcmask 1045504
        %v1076 = vsel %vm1074, %v985, 0
        %1078 = vmatprep.subr.bf16.mxu0 0
        %1079 = vmatpush1.bf16.msra.mxu0 %v1076
        %1080 = vmatprep.subr.bf16.mxu0 0
        %1081 = vmatpush1.bf16.msra.mxu0 0
        %1082 = vmatprep.subr.bf16.mxu0 0
        %1083 = vmatpush1.bf16.msra.mxu0 0
        %1084 = vmatprep.subr.bf16.mxu0 0
        %1085 = vmatpush1.bf16.msra.mxu0 0
        %1086 = vmatprep.subr.bf16.mxu0 0
        %1087 = vmatpush1.bf16.msra.mxu0 0
        %1088 = vmatprep.subr.bf16.mxu0 0
        %1089 = vmatpush1.bf16.msra.mxu0 0
        %1090 = vmatprep.subr.bf16.mxu0 0
        %1091 = vmatpush1.bf16.msra.mxu0 0
        %1092 = vmatprep.subr.bf16.mxu0 0
        %1093 = vmatpush1.bf16.msra.mxu0 0
        %1094 = vmatprep.subr.bf16.mxu0 0
        %1095 = vmatpush1.bf16.msra.mxu0 0
        %1096 = vmatprep.subr.bf16.mxu0 0
        %1097 = vmatpush1.bf16.msra.mxu0 0
        %1098 = vmatprep.subr.bf16.mxu0 0
        %1099 = vmatpush1.bf16.msra.mxu0 0
        %1100 = vmatprep.subr.bf16.mxu0 0
        %1101 = vmatpush1.bf16.msra.mxu0 0
        %1102 = vmatprep.subr.bf16.mxu0 0
        %1103 = vmatpush1.bf16.msra.mxu0 0
        %1104 = vmatprep.subr.bf16.mxu0 0
        %1105 = vmatpush1.bf16.msra.mxu0 0
        %1106 = vmatprep.subr.bf16.mxu0 0
        %1107 = vmatpush1.bf16.msra.mxu0 0
        %1108 = vmatprep.subr.bf16.mxu0 0
        %1109 = vmatpush1.bf16.msra.mxu0 0
        %1110 = vmatprep.mubr.bf16.mxu0 0
        %1111 = vmatmul.mubr.bf16.gmra.mrb[0].mxu0 %v1069
        %v1112 = vpop.f32.mrb[0].mxu0
        %v1113 = vadd.f32 %v1043, %v1112
        %v1114 = vpop.f32.mrb[0].mxu0
        %v1115 = vpop.f32.mrb[0].mxu0
        %v1116 = vadd.f32 %v1046, %v1115
        %v1117 = vpop.f32.mrb[0].mxu0
        %1118 = vmatprep.mubr.bf16.mxu0 0
        %1119 = vmatmul.mubr.bf16.gmra.mrb[0].mxu0 %v1072
        %v1120 = vpop.f32.mrb[0].mxu0
        %v1121 = vadd.f32 %v1051, %v1120
        %v1122 = vpop.f32.mrb[0].mxu0
        %v1123 = vpop.f32.mrb[0].mxu0
        %v1124 = vadd.f32 %v1054, %v1123
        %v1125 = vpop.f32.mrb[0].mxu0
        %1126 = vdwg.mxu0
        %1128 = vset.pattern.permute.xlu0 0
        %1129 = vperm.xlu0 %1128, %v436
        %v1130 = vpop.permute.xlu0 %1129
        %1133 = vset.pattern.permute.xlu0 0
        %1134 = vperm.xlu0 %1133, %v437
        %v1135 = vpop.permute.xlu0 %1134
        %1138 = vset.pattern.permute.xlu0 0
        %1139 = vperm.xlu0 %1138, %v438
        %v1140 = vpop.permute.xlu0 %1139
        %1143 = vset.pattern.permute.xlu0 0
        %1144 = vperm.xlu0 %1143, %v439
        %v1145 = vpop.permute.xlu0 %1144
        %v1147 = vadd.f32 %v1113, %v1130
        %v1148 = vadd.f32 %v1116, %v1135
        %v1149 = vadd.f32 %v1121, %v1140
        %v1150 = vadd.f32 %v1124, %v1145
        %v1151 = vmax.f32 %v1147, 0.0
        %v1152 = vmax.f32 %v1148, 0.0
        %v1153 = vmax.f32 %v1149, 0.0
        %v1154 = vmax.f32 %v1150, 0.0
        %v1155 = vpack.c.bf16 %v1152, %v1151
        %v1156 = vpack.c.bf16 %v1154, %v1153
        %1158 = vset.pattern.permute.xlu0 0
        %1159 = vperm.xlu0 %1158, %v442
        %v1160 = vpop.permute.xlu0 %1159
        %1163 = vset.pattern.permute.xlu0 0
        %1164 = vperm.xlu0 %1163, %v443
        %v1165 = vpop.permute.xlu0 %1164
        %v1169 = vunpack.c.l.b16 %v440
        %v1170 = vunpack.c.l.b16 %v441
        %v1171 = vpack.c.b16 %v1170, %v1169
        %vm1172 = vcmask 261120
        %v1174 = vsel %vm1172, %v1171, 0
        %1176 = vmatprep.subr.bf16.mxu0 0
        %1177 = vmatpush1.bf16.msra.mxu0 %v1155
        %1178 = vmatprep.subr.bf16.mxu0 0
        %1179 = vmatpush1.bf16.msra.mxu0 %v1156
        %1180 = vmatprep.subr.bf16.mxu0 0
        %1181 = vmatpush1.bf16.msra.mxu0 0
        %1182 = vmatprep.subr.bf16.mxu0 0
        %1183 = vmatpush1.bf16.msra.mxu0 0
        %1184 = vmatprep.subr.bf16.mxu0 0
        %1185 = vmatpush1.bf16.msra.mxu0 0
        %1186 = vmatprep.subr.bf16.mxu0 0
        %1187 = vmatpush1.bf16.msra.mxu0 0
        %1188 = vmatprep.subr.bf16.mxu0 0
        %1189 = vmatpush1.bf16.msra.mxu0 0
        %1190 = vmatprep.subr.bf16.mxu0 0
        %1191 = vmatpush1.bf16.msra.mxu0 0
        %1192 = vmatprep.subr.bf16.mxu0 0
        %1193 = vmatpush1.bf16.msra.mxu0 0
        %1194 = vmatprep.subr.bf16.mxu0 0
        %1195 = vmatpush1.bf16.msra.mxu0 0
        %1196 = vmatprep.subr.bf16.mxu0 0
        %1197 = vmatpush1.bf16.msra.mxu0 0
        %1198 = vmatprep.subr.bf16.mxu0 0
        %1199 = vmatpush1.bf16.msra.mxu0 0
        %1200 = vmatprep.subr.bf16.mxu0 0
        %1201 = vmatpush1.bf16.msra.mxu0 0
        %1202 = vmatprep.subr.bf16.mxu0 0
        %1203 = vmatpush1.bf16.msra.mxu0 0
        %1204 = vmatprep.subr.bf16.mxu0 0
        %1205 = vmatpush1.bf16.msra.mxu0 0
        %1206 = vmatprep.subr.bf16.mxu0 0
        %1207 = vmatpush1.bf16.msra.mxu0 0
        %1208 = vmatprep.mubr.bf16.mxu0 0
        %1209 = vmatmul.mubr.bf16.gmra.mrb[0].mxu0 %v1174
        %v1210 = vpop.f32.mrb[0].mxu0
        %v1211 = vadd.f32 %v1160, %v1210
        %v1212 = vpop.f32.mrb[0].mxu0
        %v1213 = vpop.f32.mrb[0].mxu0
        %v1214 = vadd.f32 %v1165, %v1213
        %v1215 = vpop.f32.mrb[0].mxu0
        %1216 = vdwg.mxu0
        %v1217 = vmax.f32 %v1211, 0.0
        %v1218 = vmax.f32 %v1214, 0.0
        %1219 = vst [vmem:[%s394] sm:$0xff] %v1217
        %1220 = vst [vmem:[%s394 + $0x8] sm:$0xff] %v1218
        %s1221 = sand.u32 %s258, 1
        %s1222 = scalar_lea.sflag [#allocation3], %s1221
        %s1223 = sand.u32 %s258, 1
        %s1224 = smul.addr %s1223, 16
        %s1225 = scalar_lea.vmem [#allocation2], %s1224
        // Predicated region
        $region57: #{pointnet_fp_forward.1} parent=55 // pred_check
          %p1226 = pneg %p268
        $region58: #{pointnet_fp_forward.1} parent=55 // pred_check_branch
          %1228 = sbr.rel (%p1226) target = $region60
        $region59: #{pointnet_fp_forward.1} parent=55 // pred_region
          %s1230 = ssub.s32 256, 256
          %1231 = vsyncadd %s1222, %s1230
          %s1232 = smul.addr %s27, 2
          %s1233 = sadd.s32 %s28, %s1232
          %s1234 = smul.addr %s1233, 128
          %s1235 = scalar_lea.hbm %s9, %s1234
          %s1236 = sshll.u32 %s1225, 4
          %s1237 = int_to_ptr.vmem [resolvable:$true] %s1236
          %1242 = dma.vmem_to_hbm [thread:$0]  %s1237, 256, %s1235, %s1222, 128, 128, 8
        $region60: #{pointnet_fp_forward.1} parent=55 // pred_fallthru
          _
      $region56: #{pointnet_fp_forward.1} parent=5 // pred_fallthru
        _
      %p1243 = scmp.le.s32.totalorder 2, %s18
      // Predicated region
      $region61: #{pointnet_fp_forward.1} parent=5 // pred_check
        %p1244 = pneg %p1243
      $region62: #{pointnet_fp_forward.1} parent=5 // pred_check_branch
        %1246 = sbr.rel (%p1244) target = $region64
      $region63: #{pointnet_fp_forward.1} parent=5 // pred_region
        %s1247 = ssub.s32 %s18, 2
        // Predicated region
        $region65: #{pointnet_fp_forward.1} parent=63 // pred_check
          %p1248 = pneg %p274
        $region66: #{pointnet_fp_forward.1} parent=63 // pred_check_branch
          %1250 = sbr.rel (%p1248) target = $region68
        $region67: #{pointnet_fp_forward.1} parent=63 // pred_region
          %s1251 = sand.u32 %s259, 1
          %s1252 = scalar_lea.sflag [#allocation3], %s1251
          %s1253 = sand.u32 %s259, 1
          %s1254 = smul.addr %s1253, 16
          %s1255 = scalar_lea.vmem [#allocation2], %s1254
          %1256 = dma.done %s1252, 256
        $region68: #{pointnet_fp_forward.1} parent=63 // pred_fallthru
          _
      $region64: #{pointnet_fp_forward.1} parent=5 // pred_fallthru
        _
    $region6: #{pointnet_fp_forward.1} parent=1 // loop_footer
      %s22 = sadd.s32 1, %s18
    $region7: #{pointnet_fp_forward.1} parent=1 // loop_footer_branch
      %17 = sbr.rel target = $region3
    $region8: #{pointnet_fp_forward.1} parent=1 // loop_exit
      _
    %1257 = vsyncpa [#allocation3], 1
    %s1258 = scalar_lea.sflag [#allocation3], 1
    %1259 = vsyncpa %s1258, 1

</llo_original>
